<compile_context>
chip_gen: v7x
topology: tpu7x:2x2x1
jax: 0.10.0
libtpu: 0.0.40
codegen_flags: <defaults>
</compile_context>

<pallas_src>
import functools

import jax
import jax.numpy as jnp
from jax import lax
from jax.experimental import pallas as pl
from jax.experimental.pallas import tpu as pltpu

M_ALPHA = 0.185
M_LAMBDA = 0.025


def _lseh_loss_kernel(ids_row_ref, ids_col_ref, diag_row_ref, diag_col_ref,
                      scores_ref, dv_ref,
                      tot_ref, cs_ref, cim_ref,
                      colmax_ref, cs_acc, cim_acc,
                      *, max_violation, block_rows):
    pid = pl.program_id(0)

    @pl.when(pid == 0)
    def _init():
        cs_acc[...] = jnp.zeros_like(cs_acc)
        cim_acc[...] = jnp.zeros_like(cim_acc)
        if max_violation:
            colmax_ref[...] = jnp.zeros_like(colmax_ref)   # all costs are >= 0

    scores = scores_ref[...].astype(jnp.float32)           # (TM, N)
    diag_row = diag_row_ref[...].astype(jnp.float32)       # (1, N)  scores[j, j]
    diag_col = diag_col_ref[...].astype(jnp.float32)       # (TM, 1) scores[i, i]

    # c[r, j] = <dv[row0 + r], dv[j]> on the MXU, f32 accumulation.
    row0 = pl.multiple_of(pid * block_rows, block_rows)
    dv_rows = dv_ref[pl.ds(row0, block_rows), :]            # (TM, D)
    c = jnp.einsum('id,jd->ij', dv_rows, dv_ref[...],
                   preferred_element_type=jnp.float32)      # (TM, N)

    # torch_cosine_sim: sc[i, j] = c[j, i] / rowmax(c)[i]; c is exactly
    # symmetric, so the transpose is a no-op -> sc = c / rowmax(c) per row.
    # Fold M_LAMBDA into the per-row scale (N divides instead of N^2).
    d = jnp.max(c, axis=1, keepdims=True)                   # (TM, 1) full row max
    d = jnp.where(d == 0.0, 1.0, d)
    se = c * (M_LAMBDA / d) + M_ALPHA                       # (TM, N)

    # map: 0 where img_ids match.  This also zeroes the diagonal, so the
    # torch masked_fill_(I, 0) on SeMargin is redundant.
    same_img = ids_col_ref[...] == ids_row_ref[...]         # (TM,1)==(1,N) -> (TM,N)
    se = jnp.where(same_img, 0.0, se)

    base = se + scores
    # On the diagonal se == 0 and scores[i,i] - diag == 0 exactly, so the relu
    # already yields 0 -> the two eye masks on cost_s / cost_im are dropped.
    cost_s = jnp.maximum(base - diag_col, 0.0)              # (TM, N)
    cost_im = jnp.maximum(base - diag_row, 0.0)             # (TM, N)

    if max_violation:
        cs_acc[...] += jnp.sum(jnp.max(cost_s, axis=1, keepdims=True),
                               keepdims=True)
        colmax_ref[...] = jnp.maximum(colmax_ref[...],
                                      jnp.max(cost_im, axis=0, keepdims=True))
    else:
        cs_acc[...] += jnp.sum(cost_s, keepdims=True)
        cim_acc[...] += jnp.sum(cost_im, keepdims=True)

    @pl.when(pid == pl.num_programs(0) - 1)
    def _finalize():
        cs_val = cs_acc[...]
        if max_violation:
            cim_val = jnp.sum(colmax_ref[...], keepdims=True)
        else:
            cim_val = cim_acc[...]
        cs_ref[...] = cs_val
        cim_ref[...] = cim_val
        tot_ref[...] = cs_val + cim_val


def contrastive_loss_lseh(scores, im, s, ids, img_ids, dv, bemb,
                          margin=0, max_violation=False, block_rows=128):
    """Pallas equivalent of ContrastiveLossLSEH.forward.

    im / s / ids / bemb / margin are accepted for signature parity; the math of
    the PyTorch forward only uses scores, img_ids and dv (im supplies N only).
    """
    del im, s, ids, bemb, margin
    scores = jnp.asarray(scores)
    dv = jnp.asarray(dv)
    n = scores.shape[0]
    d_emb = dv.shape[1]

    # Row-tile size: lane/sublane-friendly 128 when it divides N, else a
    # single full-size block (small-N fallback).
    tm = block_rows if (n % block_rows == 0) else n
    grid = (n // tm,)

    ids_arr = jnp.asarray(img_ids, dtype=jnp.int32)
    ids_row = ids_arr.reshape(1, n)
    ids_col = ids_arr.reshape(n, 1)
    diag = jnp.diagonal(scores)                 # extracted once, native dtype
    diag_row = diag.reshape(1, n)
    diag_col = diag.reshape(n, 1)

    kernel = functools.partial(_lseh_loss_kernel,
                               max_violation=max_violation, block_rows=tm)

    out_shapes = (jax.ShapeDtypeStruct((1, 1), jnp.float32),) * 3
    out_specs = (pl.BlockSpec((1, 1), lambda i: (0, 0)),) * 3

    in_specs = [
        pl.BlockSpec((1, n), lambda i: (0, 0)),      # ids_row   (resident)
        pl.BlockSpec((tm, 1), lambda i: (i, 0)),     # ids_col   (row tile)
        pl.BlockSpec((1, n), lambda i: (0, 0)),      # diag_row  (resident)
        pl.BlockSpec((tm, 1), lambda i: (i, 0)),     # diag_col  (row tile)
        pl.BlockSpec((tm, n), lambda i: (i, 0)),     # scores    (row tile)
        pl.BlockSpec((n, d_emb), lambda i: (0, 0)),  # dv        (resident)
    ]

    scratch_shapes = [
        pltpu.VMEM((1, n), jnp.float32),   # running column-max of cost_im
        pltpu.VMEM((1, 1), jnp.float32),   # running sum for cost_s
        pltpu.VMEM((1, 1), jnp.float32),   # running sum for cost_im
    ]

    sbytes = jnp.dtype(scores.dtype).itemsize
    dbytes = jnp.dtype(dv.dtype).itemsize
    est = (2 * tm * n * sbytes          # scores tile, double buffered
           + 2 * n * d_emb * dbytes     # resident dv
           + 10 * tm * n * 4            # live f32 (tm, n) temporaries
           + 4 * tm * 128 * 4           # padded (tm, 1) column tiles
           + 8 * n * 4)                 # (1, n) rows + colmax scratch
    vmem_limit = int(min(max(est * 5 // 4, 32 * 1024 * 1024), 64 * 1024 * 1024))

    cost = pl.CostEstimate(
        flops=2 * n * n * d_emb + 12 * n * n,
        transcendentals=0,
        bytes_accessed=int(n * n * sbytes + n * d_emb * dbytes
                           + 4 * n * (4 + sbytes) + 12),
    )

    tot, cs, cim = pl.pallas_call(
        kernel,
        out_shape=out_shapes,
        grid=grid,
        in_specs=in_specs,
        out_specs=out_specs,
        scratch_shapes=scratch_shapes,
        compiler_params=pltpu.CompilerParams(
            dimension_semantics=("arbitrary",),
            vmem_limit_bytes=vmem_limit),
        cost_estimate=cost,
    )(ids_row, ids_col, diag_row, diag_col, scores, dv)

    return tot[0, 0], cs[0, 0], cim[0, 0]


def _reference_loss(scores, img_ids, dv, max_violation=False):
    """Pure-JAX literal replica of the PyTorch forward, for verification."""
    n = scores.shape[0]
    scores = scores.astype(jnp.float32)
    dv = dv.astype(jnp.float32)
    diag = jnp.diag(scores).reshape(n, 1)
    d1 = jnp.broadcast_to(diag, (n, n))
    d2 = jnp.broadcast_to(diag.T, (n, n))
    ids = jnp.asarray(img_ids)
    map_ = jnp.where(ids[:, None] == ids[None, :], 0.0, 1.0)
    c = jnp.matmul(dv, dv.T, precision=lax.Precision.HIGHEST)
    d = jnp.max(c, axis=1)
    d = jnp.where(d == 0.0, 1.0, d)
    sc = (c / d).T
    se = sc * M_LAMBDA + M_ALPHA
    se = se * map_
    eye = jnp.eye(n, dtype=bool)
    se = jnp.where(eye, 0.0, se)
    cost_s = jnp.maximum(se + scores - d1, 0.0)
    cost_im = jnp.maximum(se + scores - d2, 0.0)
    cost_s = jnp.where(eye, 0.0, cost_s)
    cost_im = jnp.where(eye, 0.0, cost_im)
    if max_violation:
        cost_s = jnp.max(cost_s, axis=1)
        cost_im = jnp.max(cost_im, axis=0)
    return cost_s.sum() + cost_im.sum(), cost_s.sum(), cost_im.sum()


if __name__ == "__main__":
    N, D_EMB = 256, 128          # small but lane-aligned (N % 128 == 0, D = 128)
    key = jax.random.PRNGKey(0)
    k1, k2, k3, k4 = jax.random.split(key, 4)

    scores = jax.random.normal(k1, (N, N), dtype=jnp.float32)
    im = jax.random.normal(k2, (N, D_EMB), dtype=jnp.float32)    # only size(0) matters
    s = jax.random.normal(k3, (N, D_EMB), dtype=jnp.float32)     # unused by forward math
    dv = jax.random.normal(k4, (N, D_EMB), dtype=jnp.float32)
    bemb = None                                                  # unused by forward math
    ids = list(range(N))                                         # unused by forward math
    img_ids = [i // 3 for i in range(N)]                         # duplicates, cross tiles

    for mv in (False, True):
        tot, cs, cim = contrastive_loss_lseh(scores, im, s, ids, img_ids, dv, bemb,
                                             max_violation=mv)
        jax.block_until_ready((tot, cs, cim))

        ref_tot, ref_cs, ref_cim = _reference_loss(scores, img_ids, dv,
                                                   max_violation=mv)
        assert jnp.allclose(tot, ref_tot, rtol=1e-5, atol=1e-2), (mv, tot, ref_tot)
        assert jnp.allclose(cs, ref_cs, rtol=1e-5, atol=1e-2), (mv, cs, ref_cs)
        assert jnp.allclose(cim, ref_cim, rtol=1e-5, atol=1e-2), (mv, cim, ref_cim)

    print("KERNEL_OK")
</pallas_src>

<mosaic_0001>
module attributes {stable_mosaic.version = 11 : i64} {
  func.func @_lseh_loss_kernel(%arg0: i32, %arg1: memref<1x256xi32, #tpu.memory_space<vmem>>, %arg2: memref<128x1xi32, #tpu.memory_space<vmem>>, %arg3: memref<1x256xf32, #tpu.memory_space<vmem>>, %arg4: memref<128x1xf32, #tpu.memory_space<vmem>>, %arg5: memref<128x256xf32, #tpu.memory_space<vmem>>, %arg6: memref<256x128xf32, #tpu.memory_space<vmem>>, %arg7: memref<1x1xf32, #tpu.memory_space<vmem>>, %arg8: memref<1x1xf32, #tpu.memory_space<vmem>>, %arg9: memref<1x1xf32, #tpu.memory_space<vmem>>, %arg10: memref<1x256xf32, #tpu.memory_space<vmem>>, %arg11: memref<1x1xf32, #tpu.memory_space<vmem>>, %arg12: memref<1x1xf32, #tpu.memory_space<vmem>>) attributes {dimension_semantics = [#tpu.dimension_semantics<arbitrary>], iteration_bounds = array<i64: 2>, scalar_prefetch = 0 : i64, scratch_operands = 3 : i64, tpu.core_type = #tpu.core_type<tc>, window_params = [{pipeline_mode = #tpu.pipeline_mode<synchronous>, transform_indices = @transform_0, window_bounds = array<i64: 1, 256>}, {transform_indices = @transform_1, window_bounds = array<i64: 128, 1>}, {pipeline_mode = #tpu.pipeline_mode<synchronous>, transform_indices = @transform_2, window_bounds = array<i64: 1, 256>}, {transform_indices = @transform_3, window_bounds = array<i64: 128, 1>}, {transform_indices = @transform_4, window_bounds = array<i64: 128, 256>}, {pipeline_mode = #tpu.pipeline_mode<synchronous>, transform_indices = @transform_5, window_bounds = array<i64: 256, 128>}, {pipeline_mode = #tpu.pipeline_mode<synchronous>, transform_indices = @transform_6, window_bounds = array<i64: 1, 1>}, {pipeline_mode = #tpu.pipeline_mode<synchronous>, transform_indices = @transform_7, window_bounds = array<i64: 1, 1>}, {pipeline_mode = #tpu.pipeline_mode<synchronous>, transform_indices = @transform_8, window_bounds = array<i64: 1, 1>}]} {
    %c0_i32 = arith.constant 0 : i32
    %0 = arith.cmpi eq, %arg0, %c0_i32 : i32
    %1 = arith.extui %0 : i1 to i32
    %c0_i32_0 = arith.constant 0 : i32
    %2 = arith.cmpi ne, %1, %c0_i32_0 : i32
    scf.if %2 {
      %cst_32 = arith.constant 0.000000e+00 : f32
      %59 = vector.broadcast %cst_32 : f32 to vector<1x1xf32>
      %c0_33 = arith.constant 0 : index
      %c0_34 = arith.constant 0 : index
      %60 = vector.load %arg11[%c0_33, %c0_34] : memref<1x1xf32, #tpu.memory_space<vmem>>, vector<1x1xf32>
      tpu.vector_store %arg11[%c0_33, %c0_34], %59 {strides = array<i32>} : memref<1x1xf32, #tpu.memory_space<vmem>>, vector<1x1xf32>,
      %cst_35 = arith.constant 0.000000e+00 : f32
      %61 = vector.broadcast %cst_35 : f32 to vector<1x1xf32>
      %c0_36 = arith.constant 0 : index
      %c0_37 = arith.constant 0 : index
      %62 = vector.load %arg12[%c0_36, %c0_37] : memref<1x1xf32, #tpu.memory_space<vmem>>, vector<1x1xf32>
      tpu.vector_store %arg12[%c0_36, %c0_37], %61 {strides = array<i32>} : memref<1x1xf32, #tpu.memory_space<vmem>>, vector<1x1xf32>,
    } else {
    }
    %c0 = arith.constant 0 : index
    %c0_1 = arith.constant 0 : index
    %3 = vector.load %arg5[%c0, %c0_1] : memref<128x256xf32, #tpu.memory_space<vmem>>, vector<128x256xf32>
    %c0_2 = arith.constant 0 : index
    %c0_3 = arith.constant 0 : index
    %4 = vector.load %arg3[%c0_2, %c0_3] : memref<1x256xf32, #tpu.memory_space<vmem>>, vector<1x256xf32>
    %c0_4 = arith.constant 0 : index
    %c0_5 = arith.constant 0 : index
    %5 = vector.load %arg4[%c0_4, %c0_5] : memref<128x1xf32, #tpu.memory_space<vmem>>, vector<128x1xf32>
    %c128_i32 = arith.constant 128 : i32
    %6 = arith.muli %arg0, %c128_i32 : i32
    %7 = tpu.assume_multiple %6, 128 : i32
    %8 = arith.index_cast %7 : i32 to index
    %c0_6 = arith.constant 0 : index
    %9 = vector.load %arg6[%8, %c0_6] : memref<256x128xf32, #tpu.memory_space<vmem>>, vector<128x128xf32>
    %c0_7 = arith.constant 0 : index
    %c0_8 = arith.constant 0 : index
    %10 = vector.load %arg6[%c0_7, %c0_8] : memref<256x128xf32, #tpu.memory_space<vmem>>, vector<256x128xf32>
    "tpu.trace_start"() <{level = 10 : i32, message = "id,jd->ij"}> : () -> ()
    %cst = arith.constant dense<0.000000e+00> : vector<128x256xf32>
    %11 = tpu.matmul %9, %10, %cst {dimension_numbers = #tpu.dot_dimension_numbers<[1], [1], [0], [0], [0, 0, 1, 0], [], []>} : vector<128x128xf32>, vector<256x128xf32>, vector<128x256xf32> -> vector<128x256xf32>
    "tpu.trace_stop"() : () -> ()
    %cst_9 = arith.constant dense<0xFF800000> : vector<128xf32>
    %12 = vector.multi_reduction <maximumf>, %11, %cst_9 [1] : vector<128x256xf32> to vector<128xf32>
    %13 = vector.shape_cast %12 : vector<128xf32> to vector<128x1xf32>
    %cst_10 = arith.constant 0.000000e+00 : f32
    %14 = vector.broadcast %cst_10 : f32 to vector<128x1xf32>
    %15 = arith.cmpf oeq, %13, %14 : vector<128x1xf32>
    %cst_11 = arith.constant 1.000000e+00 : f32
    %16 = vector.broadcast %cst_11 : f32 to vector<128x1xf32>
    %17 = arith.select %15, %16, %13 : vector<128x1xi1>, vector<128x1xf32>
    %cst_12 = arith.constant 2.500000e-02 : f32
    %18 = vector.broadcast %cst_12 : f32 to vector<128x1xf32>
    %19 = arith.divf %18, %17 : vector<128x1xf32>
    %20 = vector.broadcast %19 : vector<128x1xf32> to vector<128x256xf32>
    %21 = arith.mulf %11, %20 : vector<128x256xf32>
    %cst_13 = arith.constant 1.850000e-01 : f32
    %22 = vector.broadcast %cst_13 : f32 to vector<128x256xf32>
    %23 = arith.addf %21, %22 : vector<128x256xf32>
    %c0_14 = arith.constant 0 : index
    %c0_15 = arith.constant 0 : index
    %24 = vector.load %arg2[%c0_14, %c0_15] : memref<128x1xi32, #tpu.memory_space<vmem>>, vector<128x1xi32>
    %c0_16 = arith.constant 0 : index
    %c0_17 = arith.constant 0 : index
    %25 = vector.load %arg1[%c0_16, %c0_17] : memref<1x256xi32, #tpu.memory_space<vmem>>, vector<1x256xi32>
    %26 = vector.broadcast %24 : vector<128x1xi32> to vector<128x256xi32>
    %27 = vector.broadcast %25 : vector<1x256xi32> to vector<128x256xi32>
    %28 = arith.cmpi eq, %26, %27 : vector<128x256xi32>
    %cst_18 = arith.constant 0.000000e+00 : f32
    %29 = vector.broadcast %cst_18 : f32 to vector<128x256xf32>
    %30 = arith.select %28, %29, %23 : vector<128x256xi1>, vector<128x256xf32>
    %31 = arith.addf %30, %3 : vector<128x256xf32>
    %32 = vector.broadcast %5 : vector<128x1xf32> to vector<128x256xf32>
    %33 = arith.subf %31, %32 : vector<128x256xf32>
    %cst_19 = arith.constant 0.000000e+00 : f32
    %34 = vector.broadcast %cst_19 : f32 to vector<128x256xf32>
    %35 = arith.maximumf %33, %34 : vector<128x256xf32>
    %36 = vector.broadcast %4 : vector<1x256xf32> to vector<128x256xf32>
    %37 = arith.subf %31, %36 : vector<128x256xf32>
    %cst_20 = arith.constant 0.000000e+00 : f32
    %38 = vector.broadcast %cst_20 : f32 to vector<128x256xf32>
    %39 = arith.maximumf %37, %38 : vector<128x256xf32>
    %c0_21 = arith.constant 0 : index
    %c0_22 = arith.constant 0 : index
    %40 = vector.load %arg11[%c0_21, %c0_22] : memref<1x1xf32, #tpu.memory_space<vmem>>, vector<1x1xf32>
    %41 = vector.shape_cast %35 : vector<128x256xf32> to vector<1x128x256xf32>
    %cst_23 = arith.constant dense<0.000000e+00> : vector<1xf32>
    %42 = vector.multi_reduction <add>, %41, %cst_23 [1, 2] : vector<1x128x256xf32> to vector<1xf32>
    %43 = vector.shape_cast %42 : vector<1xf32> to vector<1x1x1xf32>
    %44 = vector.extract %43[0, 0, 0] : f32 from vector<1x1x1xf32>
    %45 = vector.broadcast %44 : f32 to vector<1x1xf32>
    %46 = arith.addf %40, %45 : vector<1x1xf32>
    %c0_24 = arith.constant 0 : index
    %c0_25 = arith.constant 0 : index
    %47 = vector.load %arg11[%c0_24, %c0_25] : memref<1x1xf32, #tpu.memory_space<vmem>>, vector<1x1xf32>
    tpu.vector_store %arg11[%c0_24, %c0_25], %46 {strides = array<i32>} : memref<1x1xf32, #tpu.memory_space<vmem>>, vector<1x1xf32>,
    %c0_26 = arith.constant 0 : index
    %c0_27 = arith.constant 0 : index
    %48 = vector.load %arg12[%c0_26, %c0_27] : memref<1x1xf32, #tpu.memory_space<vmem>>, vector<1x1xf32>
    %49 = vector.shape_cast %39 : vector<128x256xf32> to vector<1x128x256xf32>
    %cst_28 = arith.constant dense<0.000000e+00> : vector<1xf32>
    %50 = vector.multi_reduction <add>, %49, %cst_28 [1, 2] : vector<1x128x256xf32> to vector<1xf32>
    %51 = vector.shape_cast %50 : vector<1xf32> to vector<1x1x1xf32>
    %52 = vector.extract %51[0, 0, 0] : f32 from vector<1x1x1xf32>
    %53 = vector.broadcast %52 : f32 to vector<1x1xf32>
    %54 = arith.addf %48, %53 : vector<1x1xf32>
    %c0_29 = arith.constant 0 : index
    %c0_30 = arith.constant 0 : index
    %55 = vector.load %arg12[%c0_29, %c0_30] : memref<1x1xf32, #tpu.memory_space<vmem>>, vector<1x1xf32>
    tpu.vector_store %arg12[%c0_29, %c0_30], %54 {strides = array<i32>} : memref<1x1xf32, #tpu.memory_space<vmem>>, vector<1x1xf32>,
    %c1_i32 = arith.constant 1 : i32
    %56 = arith.cmpi eq, %arg0, %c1_i32 : i32
    %57 = arith.extui %56 : i1 to i32
    %c0_i32_31 = arith.constant 0 : i32
    %58 = arith.cmpi ne, %57, %c0_i32_31 : i32
    scf.if %58 {
      %c0_32 = arith.constant 0 : index
      %c0_33 = arith.constant 0 : index
      %59 = vector.load %arg11[%c0_32, %c0_33] : memref<1x1xf32, #tpu.memory_space<vmem>>, vector<1x1xf32>
      %c0_34 = arith.constant 0 : index
      %c0_35 = arith.constant 0 : index
      %60 = vector.load %arg12[%c0_34, %c0_35] : memref<1x1xf32, #tpu.memory_space<vmem>>, vector<1x1xf32>
      %c0_36 = arith.constant 0 : index
      %c0_37 = arith.constant 0 : index
      %61 = vector.load %arg8[%c0_36, %c0_37] : memref<1x1xf32, #tpu.memory_space<vmem>>, vector<1x1xf32>
      tpu.vector_store %arg8[%c0_36, %c0_37], %59 {strides = array<i32>} : memref<1x1xf32, #tpu.memory_space<vmem>>, vector<1x1xf32>,
      %c0_38 = arith.constant 0 : index
      %c0_39 = arith.constant 0 : index
      %62 = vector.load %arg9[%c0_38, %c0_39] : memref<1x1xf32, #tpu.memory_space<vmem>>, vector<1x1xf32>
      tpu.vector_store %arg9[%c0_38, %c0_39], %60 {strides = array<i32>} : memref<1x1xf32, #tpu.memory_space<vmem>>, vector<1x1xf32>,
      %63 = arith.addf %59, %60 : vector<1x1xf32>
      %c0_40 = arith.constant 0 : index
      %c0_41 = arith.constant 0 : index
      %64 = vector.load %arg7[%c0_40, %c0_41] : memref<1x1xf32, #tpu.memory_space<vmem>>, vector<1x1xf32>
      tpu.vector_store %arg7[%c0_40, %c0_41], %63 {strides = array<i32>} : memref<1x1xf32, #tpu.memory_space<vmem>>, vector<1x1xf32>,
    } else {
    }
    return
  }
  func.func @transform_0(%arg0: i32) -> (i32, i32) {
    %c0_i32 = arith.constant 0 : i32
    %c0_i32_0 = arith.constant 0 : i32
    %c0_i32_1 = arith.constant 0 : i32
    return %c0_i32, %c0_i32_0 : i32, i32
  }
  func.func @transform_1(%arg0: i32) -> (i32, i32) {
    %c0_i32 = arith.constant 0 : i32
    %c0_i32_0 = arith.constant 0 : i32
    return %arg0, %c0_i32 : i32, i32
  }
  func.func @transform_2(%arg0: i32) -> (i32, i32) {
    %c0_i32 = arith.constant 0 : i32
    %c0_i32_0 = arith.constant 0 : i32
    %c0_i32_1 = arith.constant 0 : i32
    return %c0_i32, %c0_i32_0 : i32, i32
  }
  func.func @transform_3(%arg0: i32) -> (i32, i32) {
    %c0_i32 = arith.constant 0 : i32
    %c0_i32_0 = arith.constant 0 : i32
    return %arg0, %c0_i32 : i32, i32
  }
  func.func @transform_4(%arg0: i32) -> (i32, i32) {
    %c0_i32 = arith.constant 0 : i32
    %c0_i32_0 = arith.constant 0 : i32
    return %arg0, %c0_i32 : i32, i32
  }
  func.func @transform_5(%arg0: i32) -> (i32, i32) {
    %c0_i32 = arith.constant 0 : i32
    %c0_i32_0 = arith.constant 0 : i32
    %c0_i32_1 = arith.constant 0 : i32
    return %c0_i32, %c0_i32_0 : i32, i32
  }
  func.func @transform_6(%arg0: i32) -> (i32, i32) {
    %c0_i32 = arith.constant 0 : i32
    %c0_i32_0 = arith.constant 0 : i32
    %c0_i32_1 = arith.constant 0 : i32
    return %c0_i32, %c0_i32_0 : i32, i32
  }
  func.func @transform_7(%arg0: i32) -> (i32, i32) {
    %c0_i32 = arith.constant 0 : i32
    %c0_i32_0 = arith.constant 0 : i32
    %c0_i32_1 = arith.constant 0 : i32
    return %c0_i32, %c0_i32_0 : i32, i32
  }
  func.func @transform_8(%arg0: i32) -> (i32, i32) {
    %c0_i32 = arith.constant 0 : i32
    %c0_i32_0 = arith.constant 0 : i32
    %c0_i32_1 = arith.constant 0 : i32
    return %c0_i32, %c0_i32_0 : i32, i32
  }
}

</mosaic_0001>

<llo_original>
// kernel: tpu_custom_call.1
$region0: #{tpu_custom_call.1}
  #allocation0 [shape = 'u32[]', space=smem, size = 0x4, offset = 0x4, fixed_abs, tag = 'smem constant byte address 0x4 - core index']
  #allocation1 [shape = 'u32[144,128]{1,0:T(1,128)}', space=vmem, size = 0x12000, scoped, tag = 'internal scratch']
  #allocation2 [shape = 'f32[1,256]{1,0:T(1,128)}', space=vmem, size = 0x400, scoped, tag = 'scratch operand']
  #allocation3 [shape = 'f32[1,1]{1,0:T(1,128)}', space=vmem, size = 0x200, scoped, tag = 'scratch operand']
  #allocation4 [shape = 'f32[1,1]{1,0:T(1,128)}', space=vmem, size = 0x200, scoped, tag = 'scratch operand']
  %s0 = inlined_call_operand.vmem [shape: s32[1,256], index: 0, kind: input, shape index: {}]
  %s1 = inlined_call_operand.vmem [shape: s32[256,1], index: 1, kind: input, shape index: {}]
  %s2 = inlined_call_operand.vmem [shape: f32[1,256], index: 2, kind: input, shape index: {}]
  %s3 = inlined_call_operand.vmem [shape: f32[256,1], index: 3, kind: input, shape index: {}]
  %s4 = inlined_call_operand.vmem [shape: f32[256,256], index: 4, kind: input, shape index: {}]
  %s5 = inlined_call_operand.hbm [shape: f32[256,128], index: 5, kind: input, shape index: {}]
  %s6 = inlined_call_operand.hbm [shape: f32[1,1], index: 6, kind: output, shape index: {0}]
  %s7 = inlined_call_operand.hbm [shape: f32[1,1], index: 7, kind: output, shape index: {1}]
  %s8 = inlined_call_operand.hbm [shape: f32[1,1], index: 8, kind: output, shape index: {2}]
  %9 = xla_tuple %s6, %s7, %s8
  %s10 = sld [smem:[#allocation0]]
  $region85: #{tpu_custom_call.1} parent=0
    _
  %s12 = ssub.s32 1, %s10
  %s13 = scalar_select 0, %s12, %s10
  $region1: #{tpu_custom_call.1} parent=0
    #allocation5 [shape = 'u8[131072]{0}', space=vmem, size = 0x20000, scoped, tag = 'input window, operand 5, single buffered']
    #allocation6 [shape = 's32[2]{0}', space=sflag, size = 0x8, scoped, tag = 'scoped memory for tpu_custom_call.1']
    #allocation7 [shape = 's32[2]{0}', space=sflag, size = 0x8, scoped, tag = 'scoped memory for tpu_custom_call.1']
    #allocation8 [shape = 'u8[512]{0}', space=vmem, size = 0x400, scoped, tag = 'output window, operand 0, single buffered']
    #allocation9 [shape = 'u8[512]{0}', space=vmem, size = 0x400, scoped, tag = 'output window, operand 1, single buffered']
    #allocation10 [shape = 's32[1]{0}', space=sflag, size = 0x4, scoped, tag = 'scoped memory for tpu_custom_call.1']
    #allocation11 [shape = 'u8[512]{0}', space=vmem, size = 0x400, scoped, tag = 'output window, operand 2, single buffered']
    %14 = vsyncpa [#allocation6], 0
    %15 = vsyncpa [#allocation7], 0
    %16 = vsyncpa [#allocation10], 0
    loop: start=0, step=1, limit=4
    $region2: #{tpu_custom_call.1} parent=1 // loop_pre_header
      _
    $region3: #{tpu_custom_call.1} parent=1 // loop_header
      %s18 = sphi 0, %s22
      %p19 = scmp.ge.s32.totalorder %s18, 4
      %s26 = sphi 0, %s26
      %s28 = sphi 0, %s26
      %s29 = sphi 0, %s28
      %s43 = sphi 0, %s29
      %s49 = sphi 0, %s51
      %s52 = sphi 0, %s49
      %s53 = sphi 0, %s52
      %s69 = sphi 0, %s53
      %s73 = sphi 0, %s73
      %s75 = sphi 0, %s73
      %s76 = sphi 0, %s75
      %s90 = sphi 0, %s76
      %s96 = sphi 0, %s98
      %s99 = sphi 0, %s96
      %s100 = sphi 0, %s99
      %s116 = sphi 0, %s100
      %s122 = sphi 0, %s124
      %s125 = sphi 0, %s122
      %s126 = sphi 0, %s125
      %s142 = sphi 0, %s126
      %s146 = sphi 0, %s146
      %s148 = sphi 0, %s146
      %s149 = sphi 0, %s148
      %s163 = sphi 0, %s149
      %s167 = sphi 0, %s167
      %s169 = sphi 0, %s167
      %s170 = sphi 0, %s169
      %s184 = sphi 0, %s170
      %s188 = sphi 0, %s188
      %s190 = sphi 0, %s188
      %s191 = sphi 0, %s190
      %s205 = sphi 0, %s191
      %s209 = sphi 0, %s209
      %s211 = sphi 0, %s209
      %s212 = sphi 0, %s211
      %s226 = sphi 0, %s212
    $region4: #{tpu_custom_call.1} parent=1 // loop_header_branch
      %21 = sbr.rel (%p19) target = $region8
    $region5: #{tpu_custom_call.1} parent=1 // loop_body
      %s23 = ssub.s32 %s18, 1
      %s24 = ssub.s32 %s18, 2
      %s25 = sadd.s32 %s18, 1
      %s27 = sadd.s32 %s26, 1
      %p30 = scmp.eq.s32.totalorder %s18, 1
      %p31 = scmp.ne.s32.totalorder %s26, %s28
      %p32 = scmp.eq.s32.totalorder %s18, 0
      %p33 = por %p31, %p32
      %p34 = scmp.ne.s32.totalorder %s26, %s28
      %p35 = scmp.eq.s32.totalorder %s23, 1
      %p36 = por %p34, %p35
      %p37 = scmp.ne.s32.totalorder %s28, %s29
      %p38 = scmp.eq.s32.totalorder %s23, 0
      %p39 = por %p37, %p38
      %p40 = scmp.ne.s32.totalorder %s28, %s29
      %p41 = scmp.eq.s32.totalorder %s24, 1
      %p42 = por %p40, %p41
      %p44 = scmp.ne.s32.totalorder %s29, %s43
      %p45 = scmp.eq.s32.totalorder %s24, 0
      %p46 = por %p44, %p45
      %s47 = ssub.s32 %s18, %s25
      %p48 = scmp.eq.s32.totalorder %s47, 0
      %s50 = sadd.s32 %s49, 1
      %s51 = scalar_select %p48, %s49, %s50
      %p54 = pneg %p48
      %p55 = scmp.eq.s32.totalorder %s18, 1
      %p56 = por %p54, %p55
      %p57 = scmp.ne.s32.totalorder %s49, %s52
      %p58 = scmp.eq.s32.totalorder %s18, 0
      %p59 = por %p57, %p58
      %p60 = scmp.ne.s32.totalorder %s49, %s52
      %p61 = scmp.eq.s32.totalorder %s23, 1
      %p62 = por %p60, %p61
      %p63 = scmp.ne.s32.totalorder %s52, %s53
      %p64 = scmp.eq.s32.totalorder %s23, 0
      %p65 = por %p63, %p64
      %p66 = scmp.ne.s32.totalorder %s52, %s53
      %p67 = scmp.eq.s32.totalorder %s24, 1
      %p68 = por %p66, %p67
      %p70 = scmp.ne.s32.totalorder %s53, %s69
      %p71 = scmp.eq.s32.totalorder %s24, 0
      %p72 = por %p70, %p71
      %s74 = sadd.s32 %s73, 1
      %p77 = scmp.eq.s32.totalorder %s18, 1
      %p78 = scmp.ne.s32.totalorder %s73, %s75
      %p79 = scmp.eq.s32.totalorder %s18, 0
      %p80 = por %p78, %p79
      %p81 = scmp.ne.s32.totalorder %s73, %s75
      %p82 = scmp.eq.s32.totalorder %s23, 1
      %p83 = por %p81, %p82
      %p84 = scmp.ne.s32.totalorder %s75, %s76
      %p85 = scmp.eq.s32.totalorder %s23, 0
      %p86 = por %p84, %p85
      %p87 = scmp.ne.s32.totalorder %s75, %s76
      %p88 = scmp.eq.s32.totalorder %s24, 1
      %p89 = por %p87, %p88
      %p91 = scmp.ne.s32.totalorder %s76, %s90
      %p92 = scmp.eq.s32.totalorder %s24, 0
      %p93 = por %p91, %p92
      %s94 = ssub.s32 %s18, %s25
      %p95 = scmp.eq.s32.totalorder %s94, 0
      %s97 = sadd.s32 %s96, 1
      %s98 = scalar_select %p95, %s96, %s97
      %p101 = pneg %p95
      %p102 = scmp.eq.s32.totalorder %s18, 1
      %p103 = por %p101, %p102
      %p104 = scmp.ne.s32.totalorder %s96, %s99
      %p105 = scmp.eq.s32.totalorder %s18, 0
      %p106 = por %p104, %p105
      %p107 = scmp.ne.s32.totalorder %s96, %s99
      %p108 = scmp.eq.s32.totalorder %s23, 1
      %p109 = por %p107, %p108
      %p110 = scmp.ne.s32.totalorder %s99, %s100
      %p111 = scmp.eq.s32.totalorder %s23, 0
      %p112 = por %p110, %p111
      %p113 = scmp.ne.s32.totalorder %s99, %s100
      %p114 = scmp.eq.s32.totalorder %s24, 1
      %p115 = por %p113, %p114
      %p117 = scmp.ne.s32.totalorder %s100, %s116
      %p118 = scmp.eq.s32.totalorder %s24, 0
      %p119 = por %p117, %p118
      %s120 = ssub.s32 %s18, %s25
      %p121 = scmp.eq.s32.totalorder %s120, 0
      %s123 = sadd.s32 %s122, 1
      %s124 = scalar_select %p121, %s122, %s123
      %p127 = pneg %p121
      %p128 = scmp.eq.s32.totalorder %s18, 1
      %p129 = por %p127, %p128
      %p130 = scmp.ne.s32.totalorder %s122, %s125
      %p131 = scmp.eq.s32.totalorder %s18, 0
      %p132 = por %p130, %p131
      %p133 = scmp.ne.s32.totalorder %s122, %s125
      %p134 = scmp.eq.s32.totalorder %s23, 1
      %p135 = por %p133, %p134
      %p136 = scmp.ne.s32.totalorder %s125, %s126
      %p137 = scmp.eq.s32.totalorder %s23, 0
      %p138 = por %p136, %p137
      %p139 = scmp.ne.s32.totalorder %s125, %s126
      %p140 = scmp.eq.s32.totalorder %s24, 1
      %p141 = por %p139, %p140
      %p143 = scmp.ne.s32.totalorder %s126, %s142
      %p144 = scmp.eq.s32.totalorder %s24, 0
      %p145 = por %p143, %p144
      %s147 = sadd.s32 %s146, 1
      %p150 = scmp.eq.s32.totalorder %s18, 1
      %p151 = scmp.ne.s32.totalorder %s146, %s148
      %p152 = scmp.eq.s32.totalorder %s18, 0
      %p153 = por %p151, %p152
      %p154 = scmp.ne.s32.totalorder %s146, %s148
      %p155 = scmp.eq.s32.totalorder %s23, 1
      %p156 = por %p154, %p155
      %p157 = scmp.ne.s32.totalorder %s148, %s149
      %p158 = scmp.eq.s32.totalorder %s23, 0
      %p159 = por %p157, %p158
      %p160 = scmp.ne.s32.totalorder %s148, %s149
      %p161 = scmp.eq.s32.totalorder %s24, 1
      %p162 = por %p160, %p161
      %p164 = scmp.ne.s32.totalorder %s149, %s163
      %p165 = scmp.eq.s32.totalorder %s24, 0
      %p166 = por %p164, %p165
      %s168 = sadd.s32 %s167, 1
      %p171 = scmp.eq.s32.totalorder %s18, 1
      %p172 = scmp.ne.s32.totalorder %s167, %s169
      %p173 = scmp.eq.s32.totalorder %s18, 0
      %p174 = por %p172, %p173
      %p175 = scmp.ne.s32.totalorder %s167, %s169
      %p176 = scmp.eq.s32.totalorder %s23, 1
      %p177 = por %p175, %p176
      %p178 = scmp.ne.s32.totalorder %s169, %s170
      %p179 = scmp.eq.s32.totalorder %s23, 0
      %p180 = por %p178, %p179
      %p181 = scmp.ne.s32.totalorder %s169, %s170
      %p182 = scmp.eq.s32.totalorder %s24, 1
      %p183 = por %p181, %p182
      %p185 = scmp.ne.s32.totalorder %s170, %s184
      %p186 = scmp.eq.s32.totalorder %s24, 0
      %p187 = por %p185, %p186
      %s189 = sadd.s32 %s188, 1
      %p192 = scmp.eq.s32.totalorder %s18, 1
      %p193 = scmp.ne.s32.totalorder %s188, %s190
      %p194 = scmp.eq.s32.totalorder %s18, 0
      %p195 = por %p193, %p194
      %p196 = scmp.ne.s32.totalorder %s188, %s190
      %p197 = scmp.eq.s32.totalorder %s23, 1
      %p198 = por %p196, %p197
      %p199 = scmp.ne.s32.totalorder %s190, %s191
      %p200 = scmp.eq.s32.totalorder %s23, 0
      %p201 = por %p199, %p200
      %p202 = scmp.ne.s32.totalorder %s190, %s191
      %p203 = scmp.eq.s32.totalorder %s24, 1
      %p204 = por %p202, %p203
      %p206 = scmp.ne.s32.totalorder %s191, %s205
      %p207 = scmp.eq.s32.totalorder %s24, 0
      %p208 = por %p206, %p207
      %s210 = sadd.s32 %s209, 1
      %p213 = scmp.eq.s32.totalorder %s18, 1
      %p214 = scmp.ne.s32.totalorder %s209, %s211
      %p215 = scmp.eq.s32.totalorder %s18, 0
      %p216 = por %p214, %p215
      %p217 = scmp.ne.s32.totalorder %s209, %s211
      %p218 = scmp.eq.s32.totalorder %s23, 1
      %p219 = por %p217, %p218
      %p220 = scmp.ne.s32.totalorder %s211, %s212
      %p221 = scmp.eq.s32.totalorder %s23, 0
      %p222 = por %p220, %p221
      %p223 = scmp.ne.s32.totalorder %s211, %s212
      %p224 = scmp.eq.s32.totalorder %s24, 1
      %p225 = por %p223, %p224
      %p227 = scmp.ne.s32.totalorder %s212, %s226
      %p228 = scmp.eq.s32.totalorder %s24, 0
      %p229 = por %p227, %p228
      %p230 = scmp.le.s32.totalorder 1, %s18
      %p231 = scmp.lt.s32.totalorder %s18, 3
      %p232 = pnand %p230, %p231
      %p233 = pneg %p232
      // Predicated region
      $region9: #{tpu_custom_call.1} parent=5 // pred_check
        _
      $region10: #{tpu_custom_call.1} parent=5 // pred_check_branch
        %235 = sbr.rel (%p232) target = $region12
      $region11: #{tpu_custom_call.1} parent=5 // pred_region
        %s236 = ssub.s32 %s18, 1
        // Predicated region
        $region13: #{tpu_custom_call.1} parent=11 // pred_check
          %p237 = pneg %p39
        $region14: #{tpu_custom_call.1} parent=11 // pred_check_branch
          %239 = sbr.rel (%p237) target = $region16
        $region15: #{tpu_custom_call.1} parent=11 // pred_region
          _
        $region16: #{tpu_custom_call.1} parent=11 // pred_fallthru
          _
        // Predicated region
        $region17: #{tpu_custom_call.1} parent=11 // pred_check
          %p240 = pneg %p86
        $region18: #{tpu_custom_call.1} parent=11 // pred_check_branch
          %242 = sbr.rel (%p240) target = $region20
        $region19: #{tpu_custom_call.1} parent=11 // pred_region
          _
        $region20: #{tpu_custom_call.1} parent=11 // pred_fallthru
          _
        // Predicated region
        $region21: #{tpu_custom_call.1} parent=11 // pred_check
          %p243 = pneg %p159
        $region22: #{tpu_custom_call.1} parent=11 // pred_check_branch
          %245 = sbr.rel (%p243) target = $region24
        $region23: #{tpu_custom_call.1} parent=11 // pred_region
          %s247 = ssub.s32 4096, 4096
          %248 = vsyncadd [#allocation6], %s247
          %s249 = sshll.u32 [#allocation5], 4
          %s250 = int_to_ptr.vmem [resolvable:$true] %s249
          %255 = dma.hbm_to_vmem [thread:$0]  %s5, 4096, %s250, [#allocation6], 128, 128, 8
        $region24: #{tpu_custom_call.1} parent=11 // pred_fallthru
          _
      $region12: #{tpu_custom_call.1} parent=5 // pred_fallthru
        _
      %p256 = scmp.lt.s32.totalorder %s18, 2
      // Predicated region
      $region25: #{tpu_custom_call.1} parent=5 // pred_check
        %p257 = pneg %p256
      $region26: #{tpu_custom_call.1} parent=5 // pred_check_branch
        %259 = sbr.rel (%p257) target = $region28
      $region27: #{tpu_custom_call.1} parent=5 // pred_region
        // Predicated region
        $region29: #{tpu_custom_call.1} parent=27 // pred_check
          %p260 = pneg %p59
        $region30: #{tpu_custom_call.1} parent=27 // pred_check_branch
          %262 = sbr.rel (%p260) target = $region32
        $region31: #{tpu_custom_call.1} parent=27 // pred_region
          %s263 = smul.u32 16, %s18
          %p264 = scmp.lt.s32.totalorder %s263, 31
          %s265 = scalar_select %p264, %s263, 31
          %s266 = smul.addr %s265, 8
          %s267 = scalar_lea.vmem %s1, %s266
          %s268 = smul.u32 16, %s18
        $region32: #{tpu_custom_call.1} parent=27 // pred_fallthru
          _
        // Predicated region
        $region33: #{tpu_custom_call.1} parent=27 // pred_check
          %p269 = pneg %p106
        $region34: #{tpu_custom_call.1} parent=27 // pred_check_branch
          %271 = sbr.rel (%p269) target = $region36
        $region35: #{tpu_custom_call.1} parent=27 // pred_region
          %s272 = smul.u32 16, %s18
          %p273 = scmp.lt.s32.totalorder %s272, 31
          %s274 = scalar_select %p273, %s272, 31
          %s275 = smul.addr %s274, 8
          %s276 = scalar_lea.vmem %s3, %s275
          %s277 = smul.u32 16, %s18
        $region36: #{tpu_custom_call.1} parent=27 // pred_fallthru
          _
        // Predicated region
        $region37: #{tpu_custom_call.1} parent=27 // pred_check
          %p278 = pneg %p132
        $region38: #{tpu_custom_call.1} parent=27 // pred_check_branch
          %280 = sbr.rel (%p278) target = $region40
        $region39: #{tpu_custom_call.1} parent=27 // pred_region
          %s281 = smul.u32 16, %s18
          %p282 = scmp.lt.s32.totalorder %s281, 31
          %s283 = scalar_select %p282, %s281, 31
          %s284 = smul.addr %s283, 2
          %s285 = smul.addr %s284, 8
          %s286 = scalar_lea.vmem %s4, %s285
          %s287 = smul.u32 16, %s18
        $region40: #{tpu_custom_call.1} parent=27 // pred_fallthru
          _
      $region28: #{tpu_custom_call.1} parent=5 // pred_fallthru
        _
      %p288 = scmp.le.s32.totalorder 1, %s18
      %p289 = scmp.lt.s32.totalorder %s18, 3
      %p290 = pnand %p288, %p289
      %p291 = pneg %p290
      // Predicated region
      $region41: #{tpu_custom_call.1} parent=5 // pred_check
        _
      $region42: #{tpu_custom_call.1} parent=5 // pred_check_branch
        %293 = sbr.rel (%p290) target = $region44
      $region43: #{tpu_custom_call.1} parent=5 // pred_region
        %s294 = ssub.s32 %s18, 1
        // Predicated region
        $region45: #{tpu_custom_call.1} parent=43 // pred_check
          %p295 = pneg %p159
        $region46: #{tpu_custom_call.1} parent=43 // pred_check_branch
          %297 = sbr.rel (%p295) target = $region48
        $region47: #{tpu_custom_call.1} parent=43 // pred_region
          %298 = dma.done [#allocation6], 4096
        $region48: #{tpu_custom_call.1} parent=43 // pred_fallthru
          _
        %p299 = pneg %p39
        %p300 = pneg %p36
        %s301 = smul.u32 16, %s23
        %p302 = scmp.lt.s32.totalorder %s301, 31
        %s303 = scalar_select %p302, %s301, 31
        %s304 = smul.addr %s303, 8
        %s305 = scalar_lea.vmem %s1, %s304
        %p306 = pneg %p65
        %p307 = pneg %p62
        %p308 = pneg %p86
        %p309 = pneg %p83
        %s310 = smul.u32 16, %s23
        %p311 = scmp.lt.s32.totalorder %s310, 31
        %s312 = scalar_select %p311, %s310, 31
        %s313 = smul.addr %s312, 8
        %s314 = scalar_lea.vmem %s3, %s313
        %p315 = pneg %p112
        %p316 = pneg %p109
        %s317 = smul.u32 16, %s23
        %p318 = scmp.lt.s32.totalorder %s317, 31
        %s319 = scalar_select %p318, %s317, 31
        %s320 = smul.addr %s319, 2
        %s321 = smul.addr %s320, 8
        %s322 = scalar_lea.vmem %s4, %s321
        %p323 = pneg %p138
        %p324 = pneg %p135
        %p325 = pneg %p159
        %p326 = pneg %p156
        %p327 = pneg %p180
        %p328 = pneg %p177
        %p329 = pneg %p201
        %p330 = pneg %p198
        %p331 = pneg %p222
        %p332 = pneg %p219
        %s333 = smul.u32 16, %s23
        %p334 = scmp.lt.s32.totalorder %s333, 31
        %s335 = scalar_select %p334, %s333, 31
        %s336 = smul.addr %s335, 8
        %s337 = scalar_lea.vmem %s1, %s336
        %s338 = smul.u32 16, %s23
        %s339 = smul.u32 16, %s23
        %p340 = scmp.lt.s32.totalorder %s339, 31
        %s341 = scalar_select %p340, %s339, 31
        %s342 = smul.addr %s341, 8
        %s343 = scalar_lea.vmem %s3, %s342
        %s344 = smul.u32 16, %s23
        %s345 = smul.u32 16, %s23
        %p346 = scmp.lt.s32.totalorder %s345, 31
        %s347 = scalar_select %p346, %s345, 31
        %s348 = smul.addr %s347, 2
        %s349 = smul.addr %s348, 8
        %s350 = scalar_lea.vmem %s4, %s349
        %s351 = smul.u32 16, %s23
        %p352 = scmp.eq.s32.totalorder %s23, 0
        // Predicated region
        $region49: #{tpu_custom_call.1} parent=43 // pred_check
          %p353 = pneg %p352
        $region50: #{tpu_custom_call.1} parent=43 // pred_check_branch
          %355 = sbr.rel (%p353) target = $region52
        $region51: #{tpu_custom_call.1} parent=43 // pred_region
          %vm356 = vcmask 0
          %357 = vst.msk [vmem:[#allocation3] sm:$0x1] %vm356, 0.0
          %358 = vst.msk [vmem:[#allocation4] sm:$0x1] %vm356, 0.0
        $region52: #{tpu_custom_call.1} parent=43 // pred_fallthru
          _
        %v359 = vld [vmem:[%s350] sm:$0xff]
        %v360 = vld [vmem:[%s350 + $0x8] sm:$0xff]
        %v361 = vld [vmem:[%s350 + $0x10] sm:$0xff]
        %v362 = vld [vmem:[%s350 + $0x18] sm:$0xff]
        %v363 = vld [vmem:[%s350 + $0x20] sm:$0xff]
        %v364 = vld [vmem:[%s350 + $0x28] sm:$0xff]
        %v365 = vld [vmem:[%s350 + $0x30] sm:$0xff]
        %v366 = vld [vmem:[%s350 + $0x38] sm:$0xff]
        %v367 = vld [vmem:[%s350 + $0x40] sm:$0xff]
        %v368 = vld [vmem:[%s350 + $0x48] sm:$0xff]
        %v369 = vld [vmem:[%s350 + $0x50] sm:$0xff]
        %v370 = vld [vmem:[%s350 + $0x58] sm:$0xff]
        %v371 = vld [vmem:[%s350 + $0x60] sm:$0xff]
        %v372 = vld [vmem:[%s350 + $0x68] sm:$0xff]
        %v373 = vld [vmem:[%s350 + $0x70] sm:$0xff]
        %v374 = vld [vmem:[%s350 + $0x78] sm:$0xff]
        %v375 = vld [vmem:[%s350 + $0x80] sm:$0xff]
        %v376 = vld [vmem:[%s350 + $0x88] sm:$0xff]
        %v377 = vld [vmem:[%s350 + $0x90] sm:$0xff]
        %v378 = vld [vmem:[%s350 + $0x98] sm:$0xff]
        %v379 = vld [vmem:[%s350 + $0xa0] sm:$0xff]
        %v380 = vld [vmem:[%s350 + $0xa8] sm:$0xff]
        %v381 = vld [vmem:[%s350 + $0xb0] sm:$0xff]
        %v382 = vld [vmem:[%s350 + $0xb8] sm:$0xff]
        %v383 = vld [vmem:[%s350 + $0xc0] sm:$0xff]
        %v384 = vld [vmem:[%s350 + $0xc8] sm:$0xff]
        %v385 = vld [vmem:[%s350 + $0xd0] sm:$0xff]
        %v386 = vld [vmem:[%s350 + $0xd8] sm:$0xff]
        %v387 = vld [vmem:[%s350 + $0xe0] sm:$0xff]
        %v388 = vld [vmem:[%s350 + $0xe8] sm:$0xff]
        %v389 = vld [vmem:[%s350 + $0xf0] sm:$0xff]
        %v390 = vld [vmem:[%s350 + $0xf8] sm:$0xff]
        %v391 = vld [vmem:[%s2] sm:$0x3]
        %v392 = vld [vmem:[%s343] sm:$0xff]
        %v393 = vld [vmem:[%s343 + $0x8] sm:$0xff]
        %v394 = vld [vmem:[%s343 + $0x10] sm:$0xff]
        %v395 = vld [vmem:[%s343 + $0x18] sm:$0xff]
        %v396 = vld [vmem:[%s343 + $0x20] sm:$0xff]
        %v397 = vld [vmem:[%s343 + $0x28] sm:$0xff]
        %v398 = vld [vmem:[%s343 + $0x30] sm:$0xff]
        %v399 = vld [vmem:[%s343 + $0x38] sm:$0xff]
        %v400 = vld [vmem:[%s343 + $0x40] sm:$0xff]
        %v401 = vld [vmem:[%s343 + $0x48] sm:$0xff]
        %v402 = vld [vmem:[%s343 + $0x50] sm:$0xff]
        %v403 = vld [vmem:[%s343 + $0x58] sm:$0xff]
        %v404 = vld [vmem:[%s343 + $0x60] sm:$0xff]
        %v405 = vld [vmem:[%s343 + $0x68] sm:$0xff]
        %v406 = vld [vmem:[%s343 + $0x70] sm:$0xff]
        %v407 = vld [vmem:[%s343 + $0x78] sm:$0xff]
        %s408 = smul.u32 %s23, 128
        %s409 = scalar_lea.vmem [#allocation5], %s408
        %v410 = vld [vmem:[%s409] sm:$0xff]
        %v411 = vld [vmem:[%s409 + $0x8] sm:$0xff]
        %v412 = vld [vmem:[%s409 + $0x10] sm:$0xff]
        %v413 = vld [vmem:[%s409 + $0x18] sm:$0xff]
        %v414 = vld [vmem:[%s409 + $0x20] sm:$0xff]
        %v415 = vld [vmem:[%s409 + $0x28] sm:$0xff]
        %v416 = vld [vmem:[%s409 + $0x30] sm:$0xff]
        %v417 = vld [vmem:[%s409 + $0x38] sm:$0xff]
        %v418 = vld [vmem:[%s409 + $0x40] sm:$0xff]
        %v419 = vld [vmem:[%s409 + $0x48] sm:$0xff]
        %v420 = vld [vmem:[%s409 + $0x50] sm:$0xff]
        %v421 = vld [vmem:[%s409 + $0x58] sm:$0xff]
        %v422 = vld [vmem:[%s409 + $0x60] sm:$0xff]
        %v423 = vld [vmem:[%s409 + $0x68] sm:$0xff]
        %v424 = vld [vmem:[%s409 + $0x70] sm:$0xff]
        %v425 = vld [vmem:[%s409 + $0x78] sm:$0xff]
        %v426 = vld [vmem:[#allocation5] sm:$0xff]
        %v427 = vld [vmem:[#allocation5 + $0x8] sm:$0xff]
        %v428 = vld [vmem:[#allocation5 + $0x10] sm:$0xff]
        %v429 = vld [vmem:[#allocation5 + $0x18] sm:$0xff]
        %v430 = vld [vmem:[#allocation5 + $0x20] sm:$0xff]
        %v431 = vld [vmem:[#allocation5 + $0x28] sm:$0xff]
        %v432 = vld [vmem:[#allocation5 + $0x30] sm:$0xff]
        %v433 = vld [vmem:[#allocation5 + $0x38] sm:$0xff]
        %v434 = vld [vmem:[#allocation5 + $0x40] sm:$0xff]
        %v435 = vld [vmem:[#allocation5 + $0x48] sm:$0xff]
        %v436 = vld [vmem:[#allocation5 + $0x50] sm:$0xff]
        %v437 = vld [vmem:[#allocation5 + $0x58] sm:$0xff]
        %v438 = vld [vmem:[#allocation5 + $0x60] sm:$0xff]
        %v439 = vld [vmem:[#allocation5 + $0x68] sm:$0xff]
        %v440 = vld [vmem:[#allocation5 + $0x70] sm:$0xff]
        %v441 = vld [vmem:[#allocation5 + $0x78] sm:$0xff]
        %v442 = vld [vmem:[#allocation5 + $0x80] sm:$0xff]
        %v443 = vld [vmem:[#allocation5 + $0x88] sm:$0xff]
        %v444 = vld [vmem:[#allocation5 + $0x90] sm:$0xff]
        %v445 = vld [vmem:[#allocation5 + $0x98] sm:$0xff]
        %v446 = vld [vmem:[#allocation5 + $0xa0] sm:$0xff]
        %v447 = vld [vmem:[#allocation5 + $0xa8] sm:$0xff]
        %v448 = vld [vmem:[#allocation5 + $0xb0] sm:$0xff]
        %v449 = vld [vmem:[#allocation5 + $0xb8] sm:$0xff]
        %v450 = vld [vmem:[#allocation5 + $0xc0] sm:$0xff]
        %v451 = vld [vmem:[#allocation5 + $0xc8] sm:$0xff]
        %v452 = vld [vmem:[#allocation5 + $0xd0] sm:$0xff]
        %v453 = vld [vmem:[#allocation5 + $0xd8] sm:$0xff]
        %v454 = vld [vmem:[#allocation5 + $0xe0] sm:$0xff]
        %v455 = vld [vmem:[#allocation5 + $0xe8] sm:$0xff]
        %v456 = vld [vmem:[#allocation5 + $0xf0] sm:$0xff]
        %v457 = vld [vmem:[#allocation5 + $0xf8] sm:$0xff]
        %458 = vmatprep.subr.mxu0 0.0
        %459 = vmatpush1.xpose.msra.mxu0 %v426
        %460 = vmatprep.subr.mxu0 0.0
        %461 = vmatpush1.xpose.msra.mxu0 %v427
        %462 = vmatprep.subr.mxu0 0.0
        %463 = vmatpush1.xpose.msra.mxu0 %v428
        %464 = vmatprep.subr.mxu0 0.0
        %465 = vmatpush1.xpose.msra.mxu0 %v429
        %466 = vmatprep.subr.mxu0 0.0
        %467 = vmatpush1.xpose.msra.mxu0 %v430
        %468 = vmatprep.subr.mxu0 0.0
        %469 = vmatpush1.xpose.msra.mxu0 %v431
        %470 = vmatprep.subr.mxu0 0.0
        %471 = vmatpush1.xpose.msra.mxu0 %v432
        %472 = vmatprep.subr.mxu0 0.0
        %473 = vmatpush1.xpose.msra.mxu0 %v433
        %474 = vmatprep.subr.mxu0 0.0
        %475 = vmatpush1.xpose.msra.mxu0 %v434
        %476 = vmatprep.subr.mxu0 0.0
        %477 = vmatpush1.xpose.msra.mxu0 %v435
        %478 = vmatprep.subr.mxu0 0.0
        %479 = vmatpush1.xpose.msra.mxu0 %v436
        %480 = vmatprep.subr.mxu0 0.0
        %481 = vmatpush1.xpose.msra.mxu0 %v437
        %482 = vmatprep.subr.mxu0 0.0
        %483 = vmatpush1.xpose.msra.mxu0 %v438
        %484 = vmatprep.subr.mxu0 0.0
        %485 = vmatpush1.xpose.msra.mxu0 %v439
        %486 = vmatprep.subr.mxu0 0.0
        %487 = vmatpush1.xpose.msra.mxu0 %v440
        %488 = vmatprep.subr.mxu0 0.0
        %489 = vmatpush1.xpose.msra.mxu0 %v441
        %490 = vmatprep.subr.mxu0 0.0
        %491 = vmatpush1.xpose.msra.mxu0 %v442
        %492 = vmatprep.subr.mxu0 0.0
        %493 = vmatpush1.xpose.msra.mxu0 %v443
        %494 = vmatprep.subr.mxu0 0.0
        %495 = vmatpush1.xpose.msra.mxu0 %v444
        %496 = vmatprep.subr.mxu0 0.0
        %497 = vmatpush1.xpose.msra.mxu0 %v445
        %498 = vmatprep.subr.mxu0 0.0
        %499 = vmatpush1.xpose.msra.mxu0 %v446
        %500 = vmatprep.subr.mxu0 0.0
        %501 = vmatpush1.xpose.msra.mxu0 %v447
        %502 = vmatprep.subr.mxu0 0.0
        %503 = vmatpush1.xpose.msra.mxu0 %v448
        %504 = vmatprep.subr.mxu0 0.0
        %505 = vmatpush1.xpose.msra.mxu0 %v449
        %506 = vmatprep.subr.mxu0 0.0
        %507 = vmatpush1.xpose.msra.mxu0 %v450
        %508 = vmatprep.subr.mxu0 0.0
        %509 = vmatpush1.xpose.msra.mxu0 %v451
        %510 = vmatprep.subr.mxu0 0.0
        %511 = vmatpush1.xpose.msra.mxu0 %v452
        %512 = vmatprep.subr.mxu0 0.0
        %513 = vmatpush1.xpose.msra.mxu0 %v453
        %514 = vmatprep.subr.mxu0 0.0
        %515 = vmatpush1.xpose.msra.mxu0 %v454
        %516 = vmatprep.subr.mxu0 0.0
        %517 = vmatpush1.xpose.msra.mxu0 %v455
        %518 = vmatprep.subr.mxu0 0.0
        %519 = vmatpush1.xpose.msra.mxu0 %v456
        %520 = vmatprep.subr.mxu0 0.0
        %521 = vmatpush1.xpose.msra.mxu0 %v457
        %522 = vmatprep.mubr.f32.mxu0 0.0
        %523 = vmatmul.mubr.f32.gmra.mrb[0].mxu0 %v410
        %v524 = vpop.f32.mrb[0].mxu0
        %v525 = vadd.f32 0.0, %v524
        %v526 = vpop.f32.mrb[0].mxu0
        %v527 = vadd.f32 0.0, %v526
        %528 = vmatprep.mubr.f32.mxu0 0.0
        %529 = vmatmul.mubr.f32.gmra.mrb[0].mxu0 %v411
        %v530 = vpop.f32.mrb[0].mxu0
        %v531 = vadd.f32 0.0, %v530
        %v532 = vpop.f32.mrb[0].mxu0
        %v533 = vadd.f32 0.0, %v532
        %534 = vmatprep.mubr.f32.mxu0 0.0
        %535 = vmatmul.mubr.f32.gmra.mrb[0].mxu0 %v412
        %v536 = vpop.f32.mrb[0].mxu0
        %v537 = vadd.f32 0.0, %v536
        %v538 = vpop.f32.mrb[0].mxu0
        %v539 = vadd.f32 0.0, %v538
        %540 = vmatprep.mubr.f32.mxu0 0.0
        %541 = vmatmul.mubr.f32.gmra.mrb[0].mxu0 %v413
        %v542 = vpop.f32.mrb[0].mxu0
        %v543 = vadd.f32 0.0, %v542
        %v544 = vpop.f32.mrb[0].mxu0
        %v545 = vadd.f32 0.0, %v544
        %546 = vmatprep.mubr.f32.mxu0 0.0
        %547 = vmatmul.mubr.f32.gmra.mrb[0].mxu0 %v414
        %v548 = vpop.f32.mrb[0].mxu0
        %v549 = vadd.f32 0.0, %v548
        %v550 = vpop.f32.mrb[0].mxu0
        %v551 = vadd.f32 0.0, %v550
        %552 = vmatprep.mubr.f32.mxu0 0.0
        %553 = vmatmul.mubr.f32.gmra.mrb[0].mxu0 %v415
        %v554 = vpop.f32.mrb[0].mxu0
        %v555 = vadd.f32 0.0, %v554
        %v556 = vpop.f32.mrb[0].mxu0
        %v557 = vadd.f32 0.0, %v556
        %558 = vmatprep.mubr.f32.mxu0 0.0
        %559 = vmatmul.mubr.f32.gmra.mrb[0].mxu0 %v416
        %v560 = vpop.f32.mrb[0].mxu0
        %v561 = vadd.f32 0.0, %v560
        %v562 = vpop.f32.mrb[0].mxu0
        %v563 = vadd.f32 0.0, %v562
        %564 = vmatprep.mubr.f32.mxu0 0.0
        %565 = vmatmul.mubr.f32.gmra.mrb[0].mxu0 %v417
        %v566 = vpop.f32.mrb[0].mxu0
        %v567 = vadd.f32 0.0, %v566
        %v568 = vpop.f32.mrb[0].mxu0
        %v569 = vadd.f32 0.0, %v568
        %570 = vmatprep.mubr.f32.mxu0 0.0
        %571 = vmatmul.mubr.f32.gmra.mrb[0].mxu0 %v418
        %v572 = vpop.f32.mrb[0].mxu0
        %v573 = vadd.f32 0.0, %v572
        %v574 = vpop.f32.mrb[0].mxu0
        %v575 = vadd.f32 0.0, %v574
        %576 = vmatprep.mubr.f32.mxu0 0.0
        %577 = vmatmul.mubr.f32.gmra.mrb[0].mxu0 %v419
        %v578 = vpop.f32.mrb[0].mxu0
        %v579 = vadd.f32 0.0, %v578
        %v580 = vpop.f32.mrb[0].mxu0
        %v581 = vadd.f32 0.0, %v580
        %582 = vmatprep.mubr.f32.mxu0 0.0
        %583 = vmatmul.mubr.f32.gmra.mrb[0].mxu0 %v420
        %v584 = vpop.f32.mrb[0].mxu0
        %v585 = vadd.f32 0.0, %v584
        %v586 = vpop.f32.mrb[0].mxu0
        %v587 = vadd.f32 0.0, %v586
        %588 = vmatprep.mubr.f32.mxu0 0.0
        %589 = vmatmul.mubr.f32.gmra.mrb[0].mxu0 %v421
        %v590 = vpop.f32.mrb[0].mxu0
        %v591 = vadd.f32 0.0, %v590
        %v592 = vpop.f32.mrb[0].mxu0
        %v593 = vadd.f32 0.0, %v592
        %594 = vmatprep.mubr.f32.mxu0 0.0
        %595 = vmatmul.mubr.f32.gmra.mrb[0].mxu0 %v422
        %v596 = vpop.f32.mrb[0].mxu0
        %v597 = vadd.f32 0.0, %v596
        %v598 = vpop.f32.mrb[0].mxu0
        %v599 = vadd.f32 0.0, %v598
        %600 = vmatprep.mubr.f32.mxu0 0.0
        %601 = vmatmul.mubr.f32.gmra.mrb[0].mxu0 %v423
        %v602 = vpop.f32.mrb[0].mxu0
        %v603 = vadd.f32 0.0, %v602
        %v604 = vpop.f32.mrb[0].mxu0
        %v605 = vadd.f32 0.0, %v604
        %606 = vmatprep.mubr.f32.mxu0 0.0
        %607 = vmatmul.mubr.f32.gmra.mrb[0].mxu0 %v424
        %v608 = vpop.f32.mrb[0].mxu0
        %v609 = vadd.f32 0.0, %v608
        %v610 = vpop.f32.mrb[0].mxu0
        %v611 = vadd.f32 0.0, %v610
        %612 = vmatprep.mubr.f32.mxu0 0.0
        %613 = vmatmul.mubr.f32.gmra.mrb[0].mxu0 %v425
        %v614 = vpop.f32.mrb[0].mxu0
        %v615 = vadd.f32 0.0, %v614
        %v616 = vpop.f32.mrb[0].mxu0
        %v617 = vadd.f32 0.0, %v616
        %618 = vdwg.mxu0
        %v619 = vmax.f32 %v525, %v527
        %620 = vmax.xlane.f32.xlu0 %v619
        %v621 = vpop.xlane.xlu0 %620
        %v622 = vmax.f32 %v531, %v533
        %623 = vmax.xlane.f32.xlu0 %v622
        %v624 = vpop.xlane.xlu0 %623
        %v625 = vmax.f32 %v537, %v539
        %626 = vmax.xlane.f32.xlu0 %v625
        %v627 = vpop.xlane.xlu0 %626
        %v628 = vmax.f32 %v543, %v545
        %629 = vmax.xlane.f32.xlu0 %v628
        %v630 = vpop.xlane.xlu0 %629
        %v631 = vmax.f32 %v549, %v551
        %632 = vmax.xlane.f32.xlu0 %v631
        %v633 = vpop.xlane.xlu0 %632
        %v634 = vmax.f32 %v555, %v557
        %635 = vmax.xlane.f32.xlu0 %v634
        %v636 = vpop.xlane.xlu0 %635
        %v637 = vmax.f32 %v561, %v563
        %638 = vmax.xlane.f32.xlu0 %v637
        %v639 = vpop.xlane.xlu0 %638
        %v640 = vmax.f32 %v567, %v569
        %641 = vmax.xlane.f32.xlu0 %v640
        %v642 = vpop.xlane.xlu0 %641
        %v643 = vmax.f32 %v573, %v575
        %644 = vmax.xlane.f32.xlu0 %v643
        %v645 = vpop.xlane.xlu0 %644
        %v646 = vmax.f32 %v579, %v581
        %647 = vmax.xlane.f32.xlu0 %v646
        %v648 = vpop.xlane.xlu0 %647
        %v649 = vmax.f32 %v585, %v587
        %650 = vmax.xlane.f32.xlu0 %v649
        %v651 = vpop.xlane.xlu0 %650
        %v652 = vmax.f32 %v591, %v593
        %653 = vmax.xlane.f32.xlu0 %v652
        %v654 = vpop.xlane.xlu0 %653
        %v655 = vmax.f32 %v597, %v599
        %656 = vmax.xlane.f32.xlu0 %v655
        %v657 = vpop.xlane.xlu0 %656
        %v658 = vmax.f32 %v603, %v605
        %659 = vmax.xlane.f32.xlu0 %v658
        %v660 = vpop.xlane.xlu0 %659
        %v661 = vmax.f32 %v609, %v611
        %662 = vmax.xlane.f32.xlu0 %v661
        %v663 = vpop.xlane.xlu0 %662
        %v664 = vmax.f32 %v615, %v617
        %665 = vmax.xlane.f32.xlu0 %v664
        %v666 = vpop.xlane.xlu0 %665
        %vm667 = vcmp.eq.f32.partialorder %v621, 0.0
        %vm668 = vcmp.eq.f32.partialorder %v624, 0.0
        %vm669 = vcmp.eq.f32.partialorder %v627, 0.0
        %vm670 = vcmp.eq.f32.partialorder %v630, 0.0
        %vm671 = vcmp.eq.f32.partialorder %v633, 0.0
        %vm672 = vcmp.eq.f32.partialorder %v636, 0.0
        %vm673 = vcmp.eq.f32.partialorder %v639, 0.0
        %vm674 = vcmp.eq.f32.partialorder %v642, 0.0
        %vm675 = vcmp.eq.f32.partialorder %v645, 0.0
        %vm676 = vcmp.eq.f32.partialorder %v648, 0.0
        %vm677 = vcmp.eq.f32.partialorder %v651, 0.0
        %vm678 = vcmp.eq.f32.partialorder %v654, 0.0
        %vm679 = vcmp.eq.f32.partialorder %v657, 0.0
        %vm680 = vcmp.eq.f32.partialorder %v660, 0.0
        %vm681 = vcmp.eq.f32.partialorder %v663, 0.0
        %vm682 = vcmp.eq.f32.partialorder %v666, 0.0
        %v683 = vsel %vm667, 1.0, %v621
        %v684 = vsel %vm668, 1.0, %v624
        %v685 = vsel %vm669, 1.0, %v627
        %v686 = vsel %vm670, 1.0, %v630
        %v687 = vsel %vm671, 1.0, %v633
        %v688 = vsel %vm672, 1.0, %v636
        %v689 = vsel %vm673, 1.0, %v639
        %v690 = vsel %vm674, 1.0, %v642
        %v691 = vsel %vm675, 1.0, %v645
        %v692 = vsel %vm676, 1.0, %v648
        %v693 = vsel %vm677, 1.0, %v651
        %v694 = vsel %vm678, 1.0, %v654
        %v695 = vsel %vm679, 1.0, %v657
        %v696 = vsel %vm680, 1.0, %v660
        %v697 = vsel %vm681, 1.0, %v663
        %v698 = vsel %vm682, 1.0, %v666
        %v699 = vrcp.pop %v683
        %v700 = vmul.f32 0.025, %v699
        %v701 = vrcp.pop %v684
        %v702 = vmul.f32 0.025, %v701
        %v703 = vrcp.pop %v685
        %v704 = vmul.f32 0.025, %v703
        %v705 = vrcp.pop %v686
        %v706 = vmul.f32 0.025, %v705
        %v707 = vrcp.pop %v687
        %v708 = vmul.f32 0.025, %v707
        %v709 = vrcp.pop %v688
        %v710 = vmul.f32 0.025, %v709
        %v711 = vrcp.pop %v689
        %v712 = vmul.f32 0.025, %v711
        %v713 = vrcp.pop %v690
        %v714 = vmul.f32 0.025, %v713
        %v715 = vrcp.pop %v691
        %v716 = vmul.f32 0.025, %v715
        %v717 = vrcp.pop %v692
        %v718 = vmul.f32 0.025, %v717
        %v719 = vrcp.pop %v693
        %v720 = vmul.f32 0.025, %v719
        %v721 = vrcp.pop %v694
        %v722 = vmul.f32 0.025, %v721
        %v723 = vrcp.pop %v695
        %v724 = vmul.f32 0.025, %v723
        %v725 = vrcp.pop %v696
        %v726 = vmul.f32 0.025, %v725
        %v727 = vrcp.pop %v697
        %v728 = vmul.f32 0.025, %v727
        %v729 = vrcp.pop %v698
        %v730 = vmul.f32 0.025, %v729
        %v731 = vmul.f32 %v525, %v700
        %v732 = vmul.f32 %v527, %v700
        %v733 = vmul.f32 %v531, %v702
        %v734 = vmul.f32 %v533, %v702
        %v735 = vmul.f32 %v537, %v704
        %v736 = vmul.f32 %v539, %v704
        %v737 = vmul.f32 %v543, %v706
        %v738 = vmul.f32 %v545, %v706
        %v739 = vmul.f32 %v549, %v708
        %v740 = vmul.f32 %v551, %v708
        %v741 = vmul.f32 %v555, %v710
        %v742 = vmul.f32 %v557, %v710
        %v743 = vmul.f32 %v561, %v712
        %v744 = vmul.f32 %v563, %v712
        %v745 = vmul.f32 %v567, %v714
        %v746 = vmul.f32 %v569, %v714
        %v747 = vmul.f32 %v573, %v716
        %v748 = vmul.f32 %v575, %v716
        %v749 = vmul.f32 %v579, %v718
        %v750 = vmul.f32 %v581, %v718
        %v751 = vmul.f32 %v585, %v720
        %v752 = vmul.f32 %v587, %v720
        %v753 = vmul.f32 %v591, %v722
        %v754 = vmul.f32 %v593, %v722
        %v755 = vmul.f32 %v597, %v724
        %v756 = vmul.f32 %v599, %v724
        %v757 = vmul.f32 %v603, %v726
        %v758 = vmul.f32 %v605, %v726
        %v759 = vmul.f32 %v609, %v728
        %v760 = vmul.f32 %v611, %v728
        %v761 = vmul.f32 %v615, %v730
        %v762 = vmul.f32 %v617, %v730
        %v763 = vadd.f32 %v731, 0.185
        %v764 = vadd.f32 %v732, 0.185
        %v765 = vadd.f32 %v733, 0.185
        %v766 = vadd.f32 %v734, 0.185
        %v767 = vadd.f32 %v735, 0.185
        %v768 = vadd.f32 %v736, 0.185
        %v769 = vadd.f32 %v737, 0.185
        %v770 = vadd.f32 %v738, 0.185
        %v771 = vadd.f32 %v739, 0.185
        %v772 = vadd.f32 %v740, 0.185
        %v773 = vadd.f32 %v741, 0.185
        %v774 = vadd.f32 %v742, 0.185
        %v775 = vadd.f32 %v743, 0.185
        %v776 = vadd.f32 %v744, 0.185
        %v777 = vadd.f32 %v745, 0.185
        %v778 = vadd.f32 %v746, 0.185
        %v779 = vadd.f32 %v747, 0.185
        %v780 = vadd.f32 %v748, 0.185
        %v781 = vadd.f32 %v749, 0.185
        %v782 = vadd.f32 %v750, 0.185
        %v783 = vadd.f32 %v751, 0.185
        %v784 = vadd.f32 %v752, 0.185
        %v785 = vadd.f32 %v753, 0.185
        %v786 = vadd.f32 %v754, 0.185
        %v787 = vadd.f32 %v755, 0.185
        %v788 = vadd.f32 %v756, 0.185
        %v789 = vadd.f32 %v757, 0.185
        %v790 = vadd.f32 %v758, 0.185
        %v791 = vadd.f32 %v759, 0.185
        %v792 = vadd.f32 %v760, 0.185
        %v793 = vadd.f32 %v761, 0.185
        %v794 = vadd.f32 %v762, 0.185
        %v795 = vld [vmem:[%s337] sm:$0xff]
        %v796 = vld [vmem:[%s337 + $0x8] sm:$0xff]
        %v797 = vld [vmem:[%s337 + $0x10] sm:$0xff]
        %v798 = vld [vmem:[%s337 + $0x18] sm:$0xff]
        %v799 = vld [vmem:[%s337 + $0x20] sm:$0xff]
        %v800 = vld [vmem:[%s337 + $0x28] sm:$0xff]
        %v801 = vld [vmem:[%s337 + $0x30] sm:$0xff]
        %v802 = vld [vmem:[%s337 + $0x38] sm:$0xff]
        %v803 = vld [vmem:[%s337 + $0x40] sm:$0xff]
        %v804 = vld [vmem:[%s337 + $0x48] sm:$0xff]
        %v805 = vld [vmem:[%s337 + $0x50] sm:$0xff]
        %v806 = vld [vmem:[%s337 + $0x58] sm:$0xff]
        %v807 = vld [vmem:[%s337 + $0x60] sm:$0xff]
        %v808 = vld [vmem:[%s337 + $0x68] sm:$0xff]
        %v809 = vld [vmem:[%s337 + $0x70] sm:$0xff]
        %v810 = vld [vmem:[%s337 + $0x78] sm:$0xff]
        %v811 = vld [vmem:[%s0] sm:$0x3]
        %812 = vset.pattern.permute.xlu0 0
        %813 = vperm.xlu0 %812, %v795
        %v814 = vpop.permute.xlu0 %813
        %815 = vset.pattern.permute.xlu0 0
        %816 = vperm.xlu0 %815, %v796
        %v817 = vpop.permute.xlu0 %816
        %818 = vset.pattern.permute.xlu0 0
        %819 = vperm.xlu0 %818, %v797
        %v820 = vpop.permute.xlu0 %819
        %821 = vset.pattern.permute.xlu0 0
        %822 = vperm.xlu0 %821, %v798
        %v823 = vpop.permute.xlu0 %822
        %824 = vset.pattern.permute.xlu0 0
        %825 = vperm.xlu0 %824, %v799
        %v826 = vpop.permute.xlu0 %825
        %827 = vset.pattern.permute.xlu0 0
        %828 = vperm.xlu0 %827, %v800
        %v829 = vpop.permute.xlu0 %828
        %830 = vset.pattern.permute.xlu0 0
        %831 = vperm.xlu0 %830, %v801
        %v832 = vpop.permute.xlu0 %831
        %833 = vset.pattern.permute.xlu0 0
        %834 = vperm.xlu0 %833, %v802
        %v835 = vpop.permute.xlu0 %834
        %836 = vset.pattern.permute.xlu0 0
        %837 = vperm.xlu0 %836, %v803
        %v838 = vpop.permute.xlu0 %837
        %839 = vset.pattern.permute.xlu0 0
        %840 = vperm.xlu0 %839, %v804
        %v841 = vpop.permute.xlu0 %840
        %842 = vset.pattern.permute.xlu0 0
        %843 = vperm.xlu0 %842, %v805
        %v844 = vpop.permute.xlu0 %843
        %845 = vset.pattern.permute.xlu0 0
        %846 = vperm.xlu0 %845, %v806
        %v847 = vpop.permute.xlu0 %846
        %848 = vset.pattern.permute.xlu0 0
        %849 = vperm.xlu0 %848, %v807
        %v850 = vpop.permute.xlu0 %849
        %851 = vset.pattern.permute.xlu0 0
        %852 = vperm.xlu0 %851, %v808
        %v853 = vpop.permute.xlu0 %852
        %854 = vset.pattern.permute.xlu0 0
        %855 = vperm.xlu0 %854, %v809
        %v856 = vpop.permute.xlu0 %855
        %857 = vset.pattern.permute.xlu0 0
        %858 = vperm.xlu0 %857, %v810
        %v859 = vpop.permute.xlu0 %858
        %v860 = vlaneseq
        %v861 = vshrl.u32 %v860, 7
        %v862 = vsub.s32 0, %v861
        %v863 = vrot.slane %v811, %v862
        %v864 = vlaneseq
        %v865 = vshrl.u32 %v864, 7
        %v866 = vsub.s32 1, %v865
        %v867 = vrot.slane %v811, %v866
        %vm868 = vcmp.eq.s32.totalorder %v814, %v863
        %vm869 = vcmp.eq.s32.totalorder %v814, %v867
        %vm870 = vcmp.eq.s32.totalorder %v817, %v863
        %vm871 = vcmp.eq.s32.totalorder %v817, %v867
        %vm872 = vcmp.eq.s32.totalorder %v820, %v863
        %vm873 = vcmp.eq.s32.totalorder %v820, %v867
        %vm874 = vcmp.eq.s32.totalorder %v823, %v863
        %vm875 = vcmp.eq.s32.totalorder %v823, %v867
        %vm876 = vcmp.eq.s32.totalorder %v826, %v863
        %vm877 = vcmp.eq.s32.totalorder %v826, %v867
        %vm878 = vcmp.eq.s32.totalorder %v829, %v863
        %vm879 = vcmp.eq.s32.totalorder %v829, %v867
        %vm880 = vcmp.eq.s32.totalorder %v832, %v863
        %vm881 = vcmp.eq.s32.totalorder %v832, %v867
        %vm882 = vcmp.eq.s32.totalorder %v835, %v863
        %vm883 = vcmp.eq.s32.totalorder %v835, %v867
        %vm884 = vcmp.eq.s32.totalorder %v838, %v863
        %vm885 = vcmp.eq.s32.totalorder %v838, %v867
        %vm886 = vcmp.eq.s32.totalorder %v841, %v863
        %vm887 = vcmp.eq.s32.totalorder %v841, %v867
        %vm888 = vcmp.eq.s32.totalorder %v844, %v863
        %vm889 = vcmp.eq.s32.totalorder %v844, %v867
        %vm890 = vcmp.eq.s32.totalorder %v847, %v863
        %vm891 = vcmp.eq.s32.totalorder %v847, %v867
        %vm892 = vcmp.eq.s32.totalorder %v850, %v863
        %vm893 = vcmp.eq.s32.totalorder %v850, %v867
        %vm894 = vcmp.eq.s32.totalorder %v853, %v863
        %vm895 = vcmp.eq.s32.totalorder %v853, %v867
        %vm896 = vcmp.eq.s32.totalorder %v856, %v863
        %vm897 = vcmp.eq.s32.totalorder %v856, %v867
        %vm898 = vcmp.eq.s32.totalorder %v859, %v863
        %vm899 = vcmp.eq.s32.totalorder %v859, %v867
        %v900 = vsel %vm868, 0.0, %v763
        %v901 = vsel %vm869, 0.0, %v764
        %v902 = vsel %vm870, 0.0, %v765
        %v903 = vsel %vm871, 0.0, %v766
        %v904 = vsel %vm872, 0.0, %v767
        %v905 = vsel %vm873, 0.0, %v768
        %v906 = vsel %vm874, 0.0, %v769
        %v907 = vsel %vm875, 0.0, %v770
        %v908 = vsel %vm876, 0.0, %v771
        %v909 = vsel %vm877, 0.0, %v772
        %v910 = vsel %vm878, 0.0, %v773
        %v911 = vsel %vm879, 0.0, %v774
        %v912 = vsel %vm880, 0.0, %v775
        %v913 = vsel %vm881, 0.0, %v776
        %v914 = vsel %vm882, 0.0, %v777
        %v915 = vsel %vm883, 0.0, %v778
        %v916 = vsel %vm884, 0.0, %v779
        %v917 = vsel %vm885, 0.0, %v780
        %v918 = vsel %vm886, 0.0, %v781
        %v919 = vsel %vm887, 0.0, %v782
        %v920 = vsel %vm888, 0.0, %v783
        %v921 = vsel %vm889, 0.0, %v784
        %v922 = vsel %vm890, 0.0, %v785
        %v923 = vsel %vm891, 0.0, %v786
        %v924 = vsel %vm892, 0.0, %v787
        %v925 = vsel %vm893, 0.0, %v788
        %v926 = vsel %vm894, 0.0, %v789
        %v927 = vsel %vm895, 0.0, %v790
        %v928 = vsel %vm896, 0.0, %v791
        %v929 = vsel %vm897, 0.0, %v792
        %v930 = vsel %vm898, 0.0, %v793
        %v931 = vsel %vm899, 0.0, %v794
        %v932 = vadd.f32 %v900, %v359
        %v933 = vadd.f32 %v901, %v360
        %v934 = vadd.f32 %v902, %v361
        %v935 = vadd.f32 %v903, %v362
        %v936 = vadd.f32 %v904, %v363
        %v937 = vadd.f32 %v905, %v364
        %v938 = vadd.f32 %v906, %v365
        %v939 = vadd.f32 %v907, %v366
        %v940 = vadd.f32 %v908, %v367
        %v941 = vadd.f32 %v909, %v368
        %v942 = vadd.f32 %v910, %v369
        %v943 = vadd.f32 %v911, %v370
        %v944 = vadd.f32 %v912, %v371
        %v945 = vadd.f32 %v913, %v372
        %v946 = vadd.f32 %v914, %v373
        %v947 = vadd.f32 %v915, %v374
        %v948 = vadd.f32 %v916, %v375
        %v949 = vadd.f32 %v917, %v376
        %v950 = vadd.f32 %v918, %v377
        %v951 = vadd.f32 %v919, %v378
        %v952 = vadd.f32 %v920, %v379
        %v953 = vadd.f32 %v921, %v380
        %v954 = vadd.f32 %v922, %v381
        %v955 = vadd.f32 %v923, %v382
        %v956 = vadd.f32 %v924, %v383
        %v957 = vadd.f32 %v925, %v384
        %v958 = vadd.f32 %v926, %v385
        %v959 = vadd.f32 %v927, %v386
        %v960 = vadd.f32 %v928, %v387
        %v961 = vadd.f32 %v929, %v388
        %v962 = vadd.f32 %v930, %v389
        %v963 = vadd.f32 %v931, %v390
        %965 = vset.pattern.permute.xlu0 0
        %966 = vperm.xlu0 %965, %v392
        %v967 = vpop.permute.xlu0 %966
        %970 = vset.pattern.permute.xlu0 0
        %971 = vperm.xlu0 %970, %v393
        %v972 = vpop.permute.xlu0 %971
        %975 = vset.pattern.permute.xlu0 0
        %976 = vperm.xlu0 %975, %v394
        %v977 = vpop.permute.xlu0 %976
        %980 = vset.pattern.permute.xlu0 0
        %981 = vperm.xlu0 %980, %v395
        %v982 = vpop.permute.xlu0 %981
        %985 = vset.pattern.permute.xlu0 0
        %986 = vperm.xlu0 %985, %v396
        %v987 = vpop.permute.xlu0 %986
        %990 = vset.pattern.permute.xlu0 0
        %991 = vperm.xlu0 %990, %v397
        %v992 = vpop.permute.xlu0 %991
        %995 = vset.pattern.permute.xlu0 0
        %996 = vperm.xlu0 %995, %v398
        %v997 = vpop.permute.xlu0 %996
        %1000 = vset.pattern.permute.xlu0 0
        %1001 = vperm.xlu0 %1000, %v399
        %v1002 = vpop.permute.xlu0 %1001
        %1005 = vset.pattern.permute.xlu0 0
        %1006 = vperm.xlu0 %1005, %v400
        %v1007 = vpop.permute.xlu0 %1006
        %1010 = vset.pattern.permute.xlu0 0
        %1011 = vperm.xlu0 %1010, %v401
        %v1012 = vpop.permute.xlu0 %1011
        %1015 = vset.pattern.permute.xlu0 0
        %1016 = vperm.xlu0 %1015, %v402
        %v1017 = vpop.permute.xlu0 %1016
        %1020 = vset.pattern.permute.xlu0 0
        %1021 = vperm.xlu0 %1020, %v403
        %v1022 = vpop.permute.xlu0 %1021
        %1025 = vset.pattern.permute.xlu0 0
        %1026 = vperm.xlu0 %1025, %v404
        %v1027 = vpop.permute.xlu0 %1026
        %1030 = vset.pattern.permute.xlu0 0
        %1031 = vperm.xlu0 %1030, %v405
        %v1032 = vpop.permute.xlu0 %1031
        %1035 = vset.pattern.permute.xlu0 0
        %1036 = vperm.xlu0 %1035, %v406
        %v1037 = vpop.permute.xlu0 %1036
        %1040 = vset.pattern.permute.xlu0 0
        %1041 = vperm.xlu0 %1040, %v407
        %v1042 = vpop.permute.xlu0 %1041
        %v1044 = vsub.f32 %v932, %v967
        %v1045 = vsub.f32 %v933, %v967
        %v1046 = vsub.f32 %v934, %v972
        %v1047 = vsub.f32 %v935, %v972
        %v1048 = vsub.f32 %v936, %v977
        %v1049 = vsub.f32 %v937, %v977
        %v1050 = vsub.f32 %v938, %v982
        %v1051 = vsub.f32 %v939, %v982
        %v1052 = vsub.f32 %v940, %v987
        %v1053 = vsub.f32 %v941, %v987
        %v1054 = vsub.f32 %v942, %v992
        %v1055 = vsub.f32 %v943, %v992
        %v1056 = vsub.f32 %v944, %v997
        %v1057 = vsub.f32 %v945, %v997
        %v1058 = vsub.f32 %v946, %v1002
        %v1059 = vsub.f32 %v947, %v1002
        %v1060 = vsub.f32 %v948, %v1007
        %v1061 = vsub.f32 %v949, %v1007
        %v1062 = vsub.f32 %v950, %v1012
        %v1063 = vsub.f32 %v951, %v1012
        %v1064 = vsub.f32 %v952, %v1017
        %v1065 = vsub.f32 %v953, %v1017
        %v1066 = vsub.f32 %v954, %v1022
        %v1067 = vsub.f32 %v955, %v1022
        %v1068 = vsub.f32 %v956, %v1027
        %v1069 = vsub.f32 %v957, %v1027
        %v1070 = vsub.f32 %v958, %v1032
        %v1071 = vsub.f32 %v959, %v1032
        %v1072 = vsub.f32 %v960, %v1037
        %v1073 = vsub.f32 %v961, %v1037
        %v1074 = vsub.f32 %v962, %v1042
        %v1075 = vsub.f32 %v963, %v1042
        %v1076 = vmax.f32 %v1044, 0.0
        %v1077 = vmax.f32 %v1045, 0.0
        %v1078 = vmax.f32 %v1046, 0.0
        %v1079 = vmax.f32 %v1047, 0.0
        %v1080 = vmax.f32 %v1048, 0.0
        %v1081 = vmax.f32 %v1049, 0.0
        %v1082 = vmax.f32 %v1050, 0.0
        %v1083 = vmax.f32 %v1051, 0.0
        %v1084 = vmax.f32 %v1052, 0.0
        %v1085 = vmax.f32 %v1053, 0.0
        %v1086 = vmax.f32 %v1054, 0.0
        %v1087 = vmax.f32 %v1055, 0.0
        %v1088 = vmax.f32 %v1056, 0.0
        %v1089 = vmax.f32 %v1057, 0.0
        %v1090 = vmax.f32 %v1058, 0.0
        %v1091 = vmax.f32 %v1059, 0.0
        %v1092 = vmax.f32 %v1060, 0.0
        %v1093 = vmax.f32 %v1061, 0.0
        %v1094 = vmax.f32 %v1062, 0.0
        %v1095 = vmax.f32 %v1063, 0.0
        %v1096 = vmax.f32 %v1064, 0.0
        %v1097 = vmax.f32 %v1065, 0.0
        %v1098 = vmax.f32 %v1066, 0.0
        %v1099 = vmax.f32 %v1067, 0.0
        %v1100 = vmax.f32 %v1068, 0.0
        %v1101 = vmax.f32 %v1069, 0.0
        %v1102 = vmax.f32 %v1070, 0.0
        %v1103 = vmax.f32 %v1071, 0.0
        %v1104 = vmax.f32 %v1072, 0.0
        %v1105 = vmax.f32 %v1073, 0.0
        %v1106 = vmax.f32 %v1074, 0.0
        %v1107 = vmax.f32 %v1075, 0.0
        %v1109 = vlaneseq
        %v1110 = vshrl.u32 %v1109, 7
        %v1111 = vsub.s32 0, %v1110
        %v1112 = vrot.slane %v391, %v1111
        %v1113 = vlaneseq
        %v1114 = vshrl.u32 %v1113, 7
        %v1115 = vsub.s32 1, %v1114
        %v1116 = vrot.slane %v391, %v1115
        %v1119 = vsub.f32 %v932, %v1112
        %v1120 = vsub.f32 %v933, %v1116
        %v1121 = vsub.f32 %v934, %v1112
        %v1122 = vsub.f32 %v935, %v1116
        %v1123 = vsub.f32 %v936, %v1112
        %v1124 = vsub.f32 %v937, %v1116
        %v1125 = vsub.f32 %v938, %v1112
        %v1126 = vsub.f32 %v939, %v1116
        %v1127 = vsub.f32 %v940, %v1112
        %v1128 = vsub.f32 %v941, %v1116
        %v1129 = vsub.f32 %v942, %v1112
        %v1130 = vsub.f32 %v943, %v1116
        %v1131 = vsub.f32 %v944, %v1112
        %v1132 = vsub.f32 %v945, %v1116
        %v1133 = vsub.f32 %v946, %v1112
        %v1134 = vsub.f32 %v947, %v1116
        %v1135 = vsub.f32 %v948, %v1112
        %v1136 = vsub.f32 %v949, %v1116
        %v1137 = vsub.f32 %v950, %v1112
        %v1138 = vsub.f32 %v951, %v1116
        %v1139 = vsub.f32 %v952, %v1112
        %v1140 = vsub.f32 %v953, %v1116
        %v1141 = vsub.f32 %v954, %v1112
        %v1142 = vsub.f32 %v955, %v1116
        %v1143 = vsub.f32 %v956, %v1112
        %v1144 = vsub.f32 %v957, %v1116
        %v1145 = vsub.f32 %v958, %v1112
        %v1146 = vsub.f32 %v959, %v1116
        %v1147 = vsub.f32 %v960, %v1112
        %v1148 = vsub.f32 %v961, %v1116
        %v1149 = vsub.f32 %v962, %v1112
        %v1150 = vsub.f32 %v963, %v1116
        %v1151 = vmax.f32 %v1119, 0.0
        %v1152 = vmax.f32 %v1120, 0.0
        %v1153 = vmax.f32 %v1121, 0.0
        %v1154 = vmax.f32 %v1122, 0.0
        %v1155 = vmax.f32 %v1123, 0.0
        %v1156 = vmax.f32 %v1124, 0.0
        %v1157 = vmax.f32 %v1125, 0.0
        %v1158 = vmax.f32 %v1126, 0.0
        %v1159 = vmax.f32 %v1127, 0.0
        %v1160 = vmax.f32 %v1128, 0.0
        %v1161 = vmax.f32 %v1129, 0.0
        %v1162 = vmax.f32 %v1130, 0.0
        %v1163 = vmax.f32 %v1131, 0.0
        %v1164 = vmax.f32 %v1132, 0.0
        %v1165 = vmax.f32 %v1133, 0.0
        %v1166 = vmax.f32 %v1134, 0.0
        %v1167 = vmax.f32 %v1135, 0.0
        %v1168 = vmax.f32 %v1136, 0.0
        %v1169 = vmax.f32 %v1137, 0.0
        %v1170 = vmax.f32 %v1138, 0.0
        %v1171 = vmax.f32 %v1139, 0.0
        %v1172 = vmax.f32 %v1140, 0.0
        %v1173 = vmax.f32 %v1141, 0.0
        %v1174 = vmax.f32 %v1142, 0.0
        %v1175 = vmax.f32 %v1143, 0.0
        %v1176 = vmax.f32 %v1144, 0.0
        %v1177 = vmax.f32 %v1145, 0.0
        %v1178 = vmax.f32 %v1146, 0.0
        %v1179 = vmax.f32 %v1147, 0.0
        %v1180 = vmax.f32 %v1148, 0.0
        %v1181 = vmax.f32 %v1149, 0.0
        %v1182 = vmax.f32 %v1150, 0.0
        %v1183 = vld [vmem:[#allocation3] sm:$0x1]
        %v1184 = vadd.f32 %v1076, %v1077
        %v1185 = vadd.f32 %v1184, %v1078
        %v1186 = vadd.f32 %v1185, %v1079
        %v1187 = vadd.f32 %v1186, %v1080
        %v1188 = vadd.f32 %v1187, %v1081
        %v1189 = vadd.f32 %v1188, %v1082
        %v1190 = vadd.f32 %v1189, %v1083
        %v1191 = vadd.f32 %v1190, %v1084
        %v1192 = vadd.f32 %v1191, %v1085
        %v1193 = vadd.f32 %v1192, %v1086
        %v1194 = vadd.f32 %v1193, %v1087
        %v1195 = vadd.f32 %v1194, %v1088
        %v1196 = vadd.f32 %v1195, %v1089
        %v1197 = vadd.f32 %v1196, %v1090
        %v1198 = vadd.f32 %v1197, %v1091
        %v1199 = vadd.f32 %v1198, %v1092
        %v1200 = vadd.f32 %v1199, %v1093
        %v1201 = vadd.f32 %v1200, %v1094
        %v1202 = vadd.f32 %v1201, %v1095
        %v1203 = vadd.f32 %v1202, %v1096
        %v1204 = vadd.f32 %v1203, %v1097
        %v1205 = vadd.f32 %v1204, %v1098
        %v1206 = vadd.f32 %v1205, %v1099
        %v1207 = vadd.f32 %v1206, %v1100
        %v1208 = vadd.f32 %v1207, %v1101
        %v1209 = vadd.f32 %v1208, %v1102
        %v1210 = vadd.f32 %v1209, %v1103
        %v1211 = vadd.f32 %v1210, %v1104
        %v1212 = vadd.f32 %v1211, %v1105
        %v1213 = vadd.f32 %v1212, %v1106
        %v1214 = vadd.f32 %v1213, %v1107
        %1215 = vadd.xlane.f32.xlu0 %v1214
        %v1216 = vpop.xlane.xlu0 %1215
        %v1217 = vrot.slane %v1216, 4
        %v1218 = vadd.f32 %v1216, %v1217
        %v1219 = vrot.slane %v1218, 2
        %v1220 = vadd.f32 %v1218, %v1219
        %v1221 = vrot.slane %v1220, 1
        %v1222 = vadd.f32 %v1220, %v1221
        %s1223 = vtos %v1222
        %v1224 = vstv %s1223
        %v1225 = vadd.f32 %v1183, %v1224
        %vm1226 = vcmask 0
        %1227 = vst.msk [vmem:[#allocation3] sm:$0x1] %vm1226, %v1225
        %v1228 = vld [vmem:[#allocation4] sm:$0x1]
        %v1229 = vadd.f32 %v1151, %v1152
        %v1230 = vadd.f32 %v1229, %v1153
        %v1231 = vadd.f32 %v1230, %v1154
        %v1232 = vadd.f32 %v1231, %v1155
        %v1233 = vadd.f32 %v1232, %v1156
        %v1234 = vadd.f32 %v1233, %v1157
        %v1235 = vadd.f32 %v1234, %v1158
        %v1236 = vadd.f32 %v1235, %v1159
        %v1237 = vadd.f32 %v1236, %v1160
        %v1238 = vadd.f32 %v1237, %v1161
        %v1239 = vadd.f32 %v1238, %v1162
        %v1240 = vadd.f32 %v1239, %v1163
        %v1241 = vadd.f32 %v1240, %v1164
        %v1242 = vadd.f32 %v1241, %v1165
        %v1243 = vadd.f32 %v1242, %v1166
        %v1244 = vadd.f32 %v1243, %v1167
        %v1245 = vadd.f32 %v1244, %v1168
        %v1246 = vadd.f32 %v1245, %v1169
        %v1247 = vadd.f32 %v1246, %v1170
        %v1248 = vadd.f32 %v1247, %v1171
        %v1249 = vadd.f32 %v1248, %v1172
        %v1250 = vadd.f32 %v1249, %v1173
        %v1251 = vadd.f32 %v1250, %v1174
        %v1252 = vadd.f32 %v1251, %v1175
        %v1253 = vadd.f32 %v1252, %v1176
        %v1254 = vadd.f32 %v1253, %v1177
        %v1255 = vadd.f32 %v1254, %v1178
        %v1256 = vadd.f32 %v1255, %v1179
        %v1257 = vadd.f32 %v1256, %v1180
        %v1258 = vadd.f32 %v1257, %v1181
        %v1259 = vadd.f32 %v1258, %v1182
        %1260 = vadd.xlane.f32.xlu0 %v1259
        %v1261 = vpop.xlane.xlu0 %1260
        %v1262 = vrot.slane %v1261, 4
        %v1263 = vadd.f32 %v1261, %v1262
        %v1264 = vrot.slane %v1263, 2
        %v1265 = vadd.f32 %v1263, %v1264
        %v1266 = vrot.slane %v1265, 1
        %v1267 = vadd.f32 %v1265, %v1266
        %s1268 = vtos %v1267
        %v1269 = vstv %s1268
        %v1270 = vadd.f32 %v1228, %v1269
        %1271 = vst.msk [vmem:[#allocation4] sm:$0x1] %vm1226, %v1270
        %p1272 = scmp.eq.s32.totalorder %s23, 1
        // Predicated region
        $region53: #{tpu_custom_call.1} parent=43 // pred_check
          %p1273 = pneg %p1272
        $region54: #{tpu_custom_call.1} parent=43 // pred_check_branch
          %1275 = sbr.rel (%p1273) target = $region56
        $region55: #{tpu_custom_call.1} parent=43 // pred_region
          %v1276 = vld [vmem:[#allocation3] sm:$0x1]
          %v1277 = vld [vmem:[#allocation4] sm:$0x1]
          %1278 = vst.msk [vmem:[#allocation9] sm:$0x1] %vm1226, %v1276
          %1279 = vst.msk [vmem:[#allocation11] sm:$0x1] %vm1226, %v1277
          %v1280 = vadd.f32 %v1276, %v1277
          %1281 = vst.msk [vmem:[#allocation8] sm:$0x1] %vm1226, %v1280
        $region56: #{tpu_custom_call.1} parent=43 // pred_fallthru
          _
        // Predicated region
        $region57: #{tpu_custom_call.1} parent=43 // pred_check
          %p1282 = pneg %p177
        $region58: #{tpu_custom_call.1} parent=43 // pred_check_branch
          %1284 = sbr.rel (%p1282) target = $region60
        $region59: #{tpu_custom_call.1} parent=43 // pred_region
          %s1286 = ssub.s32 16, 16
          %1287 = vsyncadd [#allocation7], %s1286
          %s1289 = sshll.u32 [#allocation8], 4
          %s1290 = int_to_ptr.vmem [resolvable:$true] %s1289
          %1292 = dma.vmem_to_hbm [thread:$0]  %s1290, 16, %s6, [#allocation7]
        $region60: #{tpu_custom_call.1} parent=43 // pred_fallthru
          _
        // Predicated region
        $region61: #{tpu_custom_call.1} parent=43 // pred_check
          %p1293 = pneg %p198
        $region62: #{tpu_custom_call.1} parent=43 // pred_check_branch
          %1295 = sbr.rel (%p1293) target = $region64
        $region63: #{tpu_custom_call.1} parent=43 // pred_region
          %s1297 = ssub.s32 16, 16
          %1298 = vsyncadd [#allocation10], %s1297
          %s1300 = sshll.u32 [#allocation9], 4
          %s1301 = int_to_ptr.vmem [resolvable:$true] %s1300
          %1303 = dma.vmem_to_hbm [thread:$0]  %s1301, 16, %s7, [#allocation10]
        $region64: #{tpu_custom_call.1} parent=43 // pred_fallthru
          _
        // Predicated region
        $region65: #{tpu_custom_call.1} parent=43 // pred_check
          %p1304 = pneg %p219
        $region66: #{tpu_custom_call.1} parent=43 // pred_check_branch
          %1306 = sbr.rel (%p1304) target = $region68
        $region67: #{tpu_custom_call.1} parent=43 // pred_region
          %s1308 = ssub.s32 16, 16
          %1309 = vsyncadd [#allocation10], %s1308
          %s1311 = sshll.u32 [#allocation11], 4
          %s1312 = int_to_ptr.vmem [resolvable:$true] %s1311
          %1314 = dma.vmem_to_hbm [thread:$0]  %s1312, 16, %s8, [#allocation10]
        $region68: #{tpu_custom_call.1} parent=43 // pred_fallthru
          _
        // Predicated region
        $region69: #{tpu_custom_call.1} parent=43 // pred_check
          %p1315 = pneg %p177
        $region70: #{tpu_custom_call.1} parent=43 // pred_check_branch
          %1317 = sbr.rel (%p1315) target = $region72
        $region71: #{tpu_custom_call.1} parent=43 // pred_region
          %1318 = dma.done [#allocation7], 16
        $region72: #{tpu_custom_call.1} parent=43 // pred_fallthru
          _
        // Predicated region
        $region73: #{tpu_custom_call.1} parent=43 // pred_check
          %p1319 = pneg %p198
        $region74: #{tpu_custom_call.1} parent=43 // pred_check_branch
          %1321 = sbr.rel (%p1319) target = $region76
        $region75: #{tpu_custom_call.1} parent=43 // pred_region
          %1322 = dma.done [#allocation10], 16
        $region76: #{tpu_custom_call.1} parent=43 // pred_fallthru
          _
        // Predicated region
        $region77: #{tpu_custom_call.1} parent=43 // pred_check
          %p1323 = pneg %p219
        $region78: #{tpu_custom_call.1} parent=43 // pred_check_branch
          %1325 = sbr.rel (%p1323) target = $region80
        $region79: #{tpu_custom_call.1} parent=43 // pred_region
          %1326 = dma.done [#allocation10], 16
        $region80: #{tpu_custom_call.1} parent=43 // pred_fallthru
          _
      $region44: #{tpu_custom_call.1} parent=5 // pred_fallthru
        _
      %p1327 = scmp.le.s32.totalorder 2, %s18
      // Predicated region
      $region81: #{tpu_custom_call.1} parent=5 // pred_check
        %p1328 = pneg %p1327
      $region82: #{tpu_custom_call.1} parent=5 // pred_check_branch
        %1330 = sbr.rel (%p1328) target = $region84
      $region83: #{tpu_custom_call.1} parent=5 // pred_region
        %s1331 = ssub.s32 %s18, 2
      $region84: #{tpu_custom_call.1} parent=5 // pred_fallthru
        _
    $region6: #{tpu_custom_call.1} parent=1 // loop_footer
      %s22 = sadd.s32 1, %s18
    $region7: #{tpu_custom_call.1} parent=1 // loop_footer_branch
      %17 = sbr.rel target = $region3
    $region8: #{tpu_custom_call.1} parent=1 // loop_exit
      _
    %1332 = vsyncpa [#allocation6], 1
    %s1333 = scalar_lea.sflag [#allocation6], 1
    %1334 = vsyncpa %s1333, 1
    %1335 = vsyncpa [#allocation7], 1
    %s1336 = scalar_lea.sflag [#allocation7], 1
    %1337 = vsyncpa %s1336, 1
    %1338 = vsyncpa [#allocation10], 1

</llo_original>
